<compile_context>
chip_gen: v7x
topology: tpu7x:2x2x1
jax: 0.10.0
libtpu: 0.0.40
codegen_flags: <defaults>
</compile_context>

<pallas_src>
import functools

import jax
import jax.numpy as jnp
from jax.experimental import pallas as pl
from jax.experimental.pallas import tpu as pltpu


# ----------------------------------------------------------------------------
# helpers
# ----------------------------------------------------------------------------
def _round_up(x, m):
    return (x + m - 1) // m * m


def _pad2d(a, rows, cols):
    r, c = a.shape
    if r == rows and c == cols:
        return a
    return jnp.pad(a, ((0, rows - r), (0, cols - c)))


def _fold_bn(gamma, beta, mean, var, eps=1e-5):
    scale = gamma / jnp.sqrt(var + eps)
    shift = beta - mean * scale
    return scale, shift


# ----------------------------------------------------------------------------
# Pallas kernel 1: fused BatchNorm + ReLU (applied once, before im2col)
#   operates on a lane-dense 2D view (rows, W*C) with per-column scale/shift
# ----------------------------------------------------------------------------
def _bn_relu_kernel(x_ref, s_ref, t_ref, o_ref):
    y = x_ref[...].astype(jnp.float32) * s_ref[...] + t_ref[...]
    o_ref[...] = jnp.maximum(y, 0.0).astype(o_ref.dtype)


def bn_relu_rows(x2d, scale_row, shift_row, *, out_dtype=jnp.bfloat16, tm=1024):
    M, L = x2d.shape
    tm = min(tm, _round_up(M, 8))
    Mp = _round_up(M, tm)
    out = pl.pallas_call(
        _bn_relu_kernel,
        out_shape=jax.ShapeDtypeStruct((Mp, L), out_dtype),
        grid_spec=pltpu.PrefetchScalarGridSpec(
            num_scalar_prefetch=0,
            grid=(Mp // tm,),
            in_specs=[pl.BlockSpec((tm, L), lambda i: (i, 0)),
                      pl.BlockSpec((1, L), lambda i: (0, 0)),
                      pl.BlockSpec((1, L), lambda i: (0, 0))],
            out_specs=pl.BlockSpec((tm, L), lambda i: (i, 0)),
        ),
        compiler_params=pltpu.CompilerParams(
            dimension_semantics=("parallel",)),
    )(_pad2d(x2d, Mp, L), scale_row, shift_row)
    return out[:M]


# ----------------------------------------------------------------------------
# Pallas kernel 2: fused tiled matmul (the conv GEMMs)
#   out = epilogue( A @ W )   with epilogue:
#     y <- acc + bias
#     y <- relu(y*out_scale + out_shift)   (optional, fused BN2+ReLU)
#     y <- y + residual(bf16)              (optional, fused shortcut add)
# ----------------------------------------------------------------------------
def _mm_epilogue(y, b_ref, os_ref, ot_ref, r_ref, out_dtype):
    y = y + b_ref[...]
    if os_ref is not None:
        y = jnp.maximum(y * os_ref[...] + ot_ref[...], 0.0)
    if r_ref is not None:
        y = y + r_ref[...].astype(jnp.float32)
    return y.astype(out_dtype)


def _mm_kernel_single(*refs, out_bnrelu, add_residual):
    """Whole K reduction in one shot: no K grid axis, no accumulator scratch."""
    it = iter(refs)
    a_ref, w_ref, b_ref = next(it), next(it), next(it)
    os_ref = ot_ref = r_ref = None
    if out_bnrelu:
        os_ref, ot_ref = next(it), next(it)
    if add_residual:
        r_ref = next(it)
    o_ref = next(it)

    y = jnp.dot(a_ref[...], w_ref[...], preferred_element_type=jnp.float32)
    o_ref[...] = _mm_epilogue(y, b_ref, os_ref, ot_ref, r_ref, o_ref.dtype)


def _mm_kernel_ksplit(*refs, out_bnrelu, add_residual):
    """K split over the grid: f32 VMEM accumulator, direct store at k==0."""
    it = iter(refs)
    a_ref, w_ref, b_ref = next(it), next(it), next(it)
    os_ref = ot_ref = r_ref = None
    if out_bnrelu:
        os_ref, ot_ref = next(it), next(it)
    if add_residual:
        r_ref = next(it)
    o_ref, acc_ref = next(it), next(it)

    k = pl.program_id(2)
    part = jnp.dot(a_ref[...], w_ref[...], preferred_element_type=jnp.float32)

    @pl.when(k == 0)
    def _first():
        acc_ref[...] = part          # no zero-init + RMW on the first step

    @pl.when(k > 0)
    def _rest():
        acc_ref[...] += part

    @pl.when(k == pl.num_programs(2) - 1)
    def _finish():
        o_ref[...] = _mm_epilogue(acc_ref[...], b_ref, os_ref, ot_ref, r_ref,
                                  o_ref.dtype)


def fused_matmul(a, w, bias, *, out_scale=None, out_shift=None, residual=None,
                 out_dtype=jnp.float32, tm=256, tn=256, tk=2048):
    """a:(M,K), w:(K,N), bias:(N,) -> (M,N) with fused bias/BN-ReLU/residual."""
    M, K = a.shape
    K2, N = w.shape
    assert K == K2
    out_bnrelu = out_scale is not None
    add_residual = residual is not None

    # Tile sizes: (8,128)-aligned, big enough to fill the 256-wide MXU and to
    # avoid re-streaming A many times; still only a few MiB of VMEM.
    tm = min(tm, _round_up(M, 8))
    Mp = _round_up(M, tm)
    tn = min(tn, _round_up(N, 128))
    Np = _round_up(N, tn)
    if K <= tk:
        Kp = _round_up(K, 8)          # full-K single shot (sublane aligned)
        tk_used = Kp
    else:
        tk_used = tk
        Kp = _round_up(K, tk_used)
    nk = Kp // tk_used

    a = a.astype(jnp.bfloat16)
    w = w.astype(jnp.bfloat16)
    args = [_pad2d(a, Mp, Kp),
            _pad2d(w, Kp, Np),
            _pad2d(bias.reshape(1, -1).astype(jnp.float32), 1, Np)]
    if out_bnrelu:
        args += [_pad2d(out_scale.reshape(1, -1).astype(jnp.float32), 1, Np),
                 _pad2d(out_shift.reshape(1, -1).astype(jnp.float32), 1, Np)]
    if add_residual:
        args += [_pad2d(residual.astype(jnp.bfloat16), Mp, Np)]   # bf16 residual

    if nk == 1:
        grid = (Mp // tm, Np // tn)
        in_specs = [pl.BlockSpec((tm, Kp), lambda i, j: (i, 0)),
                    pl.BlockSpec((Kp, tn), lambda i, j: (0, j)),
                    pl.BlockSpec((1, tn), lambda i, j: (0, j))]
        if out_bnrelu:
            in_specs += [pl.BlockSpec((1, tn), lambda i, j: (0, j))] * 2
        if add_residual:
            in_specs += [pl.BlockSpec((tm, tn), lambda i, j: (i, j))]
        out_specs = pl.BlockSpec((tm, tn), lambda i, j: (i, j))
        scratch = []
        kernel = functools.partial(_mm_kernel_single, out_bnrelu=out_bnrelu,
                                   add_residual=add_residual)
        dims = ("parallel", "parallel")
    else:
        grid = (Mp // tm, Np // tn, nk)
        in_specs = [pl.BlockSpec((tm, tk_used), lambda i, j, k: (i, k)),
                    pl.BlockSpec((tk_used, tn), lambda i, j, k: (k, j)),
                    pl.BlockSpec((1, tn), lambda i, j, k: (0, j))]
        if out_bnrelu:
            in_specs += [pl.BlockSpec((1, tn), lambda i, j, k: (0, j))] * 2
        if add_residual:
            in_specs += [pl.BlockSpec((tm, tn), lambda i, j, k: (i, j))]
        out_specs = pl.BlockSpec((tm, tn), lambda i, j, k: (i, j))
        scratch = [pltpu.VMEM((tm, tn), jnp.float32)]
        kernel = functools.partial(_mm_kernel_ksplit, out_bnrelu=out_bnrelu,
                                   add_residual=add_residual)
        dims = ("parallel", "parallel", "arbitrary")

    bytes_accessed = int(Mp * Kp * 2 + Kp * Np * 2
                         + Mp * Np * jnp.dtype(out_dtype).itemsize
                         + (Mp * Np * 2 if add_residual else 0))
    out = pl.pallas_call(
        kernel,
        out_shape=jax.ShapeDtypeStruct((Mp, Np), out_dtype),
        grid_spec=pltpu.PrefetchScalarGridSpec(
            num_scalar_prefetch=0,
            grid=grid,
            in_specs=in_specs,
            out_specs=out_specs,
            scratch_shapes=scratch,
        ),
        compiler_params=pltpu.CompilerParams(
            dimension_semantics=dims,
            vmem_limit_bytes=32 * 1024 * 1024,   # safe on v5e/v6e/v7x
        ),
        cost_estimate=pl.CostEstimate(flops=2 * Mp * Np * Kp,
                                      transcendentals=0,
                                      bytes_accessed=bytes_accessed),
    )(*args)
    return out[:M, :N]


# ----------------------------------------------------------------------------
# Glue: im2col for 3x3 / pad=1 convolutions (pure data movement; zero pad).
# ----------------------------------------------------------------------------
def _im2col_3x3(x_nhwc, stride):
    # TODO(synk): replace with a 9-tap K-grid index_map / manual DMA walk to
    #             avoid materializing the 9x im2col matrix in HBM.
    N, H, W, C = x_nhwc.shape
    xp = jnp.pad(x_nhwc, ((0, 0), (1, 1), (1, 1), (0, 0)))
    Ho = (H - 1) // stride + 1
    Wo = (W - 1) // stride + 1
    cols = []
    for ky in range(3):
        for kx in range(3):
            cols.append(xp[:, ky:ky + H, kx:kx + W, :][:, ::stride, ::stride, :])
    patches = jnp.concatenate(cols, axis=-1)            # (N, Ho, Wo, 9*C)
    return patches.reshape(N * Ho * Wo, 9 * C), (Ho, Wo)


# ----------------------------------------------------------------------------
# WideBlock forward (inference semantics)
# ----------------------------------------------------------------------------
@functools.partial(jax.jit, static_argnames=("stride",))
def wide_block_forward(x_nchw, p, stride=1):
    N, Cin, H, W = x_nchw.shape
    planes = p["conv1_b"].shape[0]
    x = jnp.transpose(x_nchw, (0, 2, 3, 1)).astype(jnp.float32)   # NHWC

    s1, t1 = _fold_bn(p["bn1_gamma"], p["bn1_beta"], p["bn1_mean"], p["bn1_var"])
    s2, t2 = _fold_bn(p["bn2_gamma"], p["bn2_beta"], p["bn2_mean"], p["bn2_var"])

    # ---- BN1 + ReLU applied ONCE to the raw activation (Pallas elementwise),
    #      output bf16; im2col then zero-pads exactly like PyTorch conv1. ----
    h1 = bn_relu_rows(
        x.reshape(N * H, W * Cin),
        jnp.tile(s1, W).reshape(1, -1).astype(jnp.float32),
        jnp.tile(t1, W).reshape(1, -1).astype(jnp.float32),
        out_dtype=jnp.bfloat16,
    ).reshape(N, H, W, Cin)

    # ---- conv1 (3x3, s=1, p=1) as im2col GEMM; bias + BN2 + ReLU fused into
    #      the epilogue.  Dropout is identity (inference). ----
    cols1, _ = _im2col_3x3(h1, stride=1)
    w1 = jnp.transpose(p["conv1_w"], (2, 3, 1, 0)).reshape(9 * Cin, planes)
    h2_flat = fused_matmul(cols1, w1.astype(jnp.bfloat16), p["conv1_b"],
                           out_scale=s2, out_shift=t2,
                           out_dtype=jnp.bfloat16)   # relu(bn2(conv1(...)+b1))

    # ---- shortcut (bf16 end-to-end) ----
    if stride != 1 or Cin != planes:
        xs = x[:, ::stride, ::stride, :].reshape(-1, Cin).astype(jnp.bfloat16)
        ws = p["sc_w"].reshape(planes, Cin).T.astype(jnp.bfloat16)
        sc = fused_matmul(xs, ws, p["sc_b"], out_dtype=jnp.bfloat16)
    else:
        sc = x.reshape(-1, Cin).astype(jnp.bfloat16)

    # ---- conv2 (3x3, stride, p=1): bias + residual add fused ----
    h2 = h2_flat.reshape(N, H, W, planes)
    cols2, (Ho, Wo) = _im2col_3x3(h2, stride=stride)
    w2 = jnp.transpose(p["conv2_w"], (2, 3, 1, 0)).reshape(9 * planes, planes)
    out2 = fused_matmul(cols2, w2.astype(jnp.bfloat16), p["conv2_b"],
                        residual=sc, out_dtype=jnp.float32)

    return jnp.transpose(out2.reshape(N, Ho, Wo, planes), (0, 3, 1, 2))  # NCHW


# ----------------------------------------------------------------------------
# Pure-JAX reference (same inference semantics) for a sanity check
# ----------------------------------------------------------------------------
def _ref_forward(x, p, stride=1, eps=1e-5):
    Cin = x.shape[1]
    planes = p["conv1_b"].shape[0]

    def bn(z, g, b, m, v):
        return ((z - m[None, :, None, None])
                / jnp.sqrt(v + eps)[None, :, None, None]
                * g[None, :, None, None] + b[None, :, None, None])

    dn = ("NCHW", "OIHW", "NCHW")
    hi = jax.lax.Precision.HIGHEST
    h = jax.nn.relu(bn(x, p["bn1_gamma"], p["bn1_beta"], p["bn1_mean"], p["bn1_var"]))
    out = jax.lax.conv_general_dilated(
        h, p["conv1_w"], (1, 1), ((1, 1), (1, 1)), dimension_numbers=dn,
        precision=hi) + p["conv1_b"][None, :, None, None]
    h2 = jax.nn.relu(bn(out, p["bn2_gamma"], p["bn2_beta"], p["bn2_mean"], p["bn2_var"]))
    out2 = jax.lax.conv_general_dilated(
        h2, p["conv2_w"], (stride, stride), ((1, 1), (1, 1)),
        dimension_numbers=dn, precision=hi) + p["conv2_b"][None, :, None, None]
    if stride != 1 or Cin != planes:
        sc = jax.lax.conv_general_dilated(
            x, p["sc_w"], (stride, stride), ((0, 0), (0, 0)),
            dimension_numbers=dn, precision=hi) + p["sc_b"][None, :, None, None]
    else:
        sc = x
    return out2 + sc


# ----------------------------------------------------------------------------
if __name__ == "__main__":
    root = jax.random.PRNGKey(0)
    f32 = jnp.float32

    def make_params(key, Cin, planes, need_sc):
        ks = jax.random.split(key, 16)
        p = dict(
            bn1_gamma=(1.0 + 0.1 * jax.random.normal(ks[1], (Cin,))).astype(f32),
            bn1_beta=(0.1 * jax.random.normal(ks[2], (Cin,))).astype(f32),
            bn1_mean=(0.1 * jax.random.normal(ks[3], (Cin,))).astype(f32),
            bn1_var=(jnp.abs(jax.random.normal(ks[4], (Cin,))) + 0.5).astype(f32),
            conv1_w=(0.2 * jax.random.normal(ks[5], (planes, Cin, 3, 3))).astype(f32),
            conv1_b=(0.1 * jax.random.normal(ks[6], (planes,))).astype(f32),
            bn2_gamma=(1.0 + 0.1 * jax.random.normal(ks[7], (planes,))).astype(f32),
            bn2_beta=(0.1 * jax.random.normal(ks[8], (planes,))).astype(f32),
            bn2_mean=(0.1 * jax.random.normal(ks[9], (planes,))).astype(f32),
            bn2_var=(jnp.abs(jax.random.normal(ks[10], (planes,))) + 0.5).astype(f32),
            conv2_w=(0.2 * jax.random.normal(ks[11], (planes, planes, 3, 3))).astype(f32),
            conv2_b=(0.1 * jax.random.normal(ks[12], (planes,))).astype(f32),
        )
        if need_sc:
            p["sc_w"] = (0.2 * jax.random.normal(ks[13], (planes, Cin, 1, 1))).astype(f32)
            p["sc_b"] = (0.1 * jax.random.normal(ks[14], (planes,))).astype(f32)
        return p

    configs = [
        # (N, Cin, H, W, planes, stride)
        (2, 4, 16, 16, 8, 1),   # channel-expanding block -> 1x1-conv shortcut
        (2, 8, 16, 16, 8, 1),   # identity shortcut
        (2, 4, 16, 16, 8, 2),   # strided block -> strided 1x1-conv shortcut
    ]
    for idx, (N, Cin, H, W, planes, stride) in enumerate(configs):
        kx, kp = jax.random.split(jax.random.fold_in(root, idx))
        x = jax.random.normal(kx, (N, Cin, H, W), f32)
        params = make_params(kp, Cin, planes, stride != 1 or Cin != planes)

        out = jax.block_until_ready(wide_block_forward(x, params, stride=stride))
        Ho = (H - 1) // stride + 1
        Wo = (W - 1) // stride + 1
        assert out.shape == (N, planes, Ho, Wo), out.shape

        ref = jax.block_until_ready(_ref_forward(x, params, stride=stride))
        max_err = float(jnp.max(jnp.abs(out - ref)))
        assert max_err < 1e-1, f"config {idx}: max abs error {max_err}"

    print("KERNEL_OK")
</pallas_src>

<mosaic_0001>
module attributes {stable_mosaic.version = 11 : i64} {
  func.func @_bn_relu_kernel(%arg0: i32, %arg1: memref<32x64xf32, #tpu.memory_space<vmem>>, %arg2: memref<1x64xf32, #tpu.memory_space<vmem>>, %arg3: memref<1x64xf32, #tpu.memory_space<vmem>>, %arg4: memref<32x64xbf16, #tpu.memory_space<vmem>>) attributes {dimension_semantics = [#tpu.dimension_semantics<parallel>], iteration_bounds = array<i64: 1>, scalar_prefetch = 0 : i64, scratch_operands = 0 : i64, tpu.core_type = #tpu.core_type<tc>, window_params = [{transform_indices = @transform_0, window_bounds = array<i64: 32, 64>}, {pipeline_mode = #tpu.pipeline_mode<synchronous>, transform_indices = @transform_1, window_bounds = array<i64: 1, 64>}, {pipeline_mode = #tpu.pipeline_mode<synchronous>, transform_indices = @transform_2, window_bounds = array<i64: 1, 64>}, {transform_indices = @transform_3, window_bounds = array<i64: 32, 64>}]} {
    %c0 = arith.constant 0 : index
    %c0_0 = arith.constant 0 : index
    %0 = vector.load %arg1[%c0, %c0_0] : memref<32x64xf32, #tpu.memory_space<vmem>>, vector<32x64xf32>
    %c0_1 = arith.constant 0 : index
    %c0_2 = arith.constant 0 : index
    %1 = vector.load %arg2[%c0_1, %c0_2] : memref<1x64xf32, #tpu.memory_space<vmem>>, vector<1x64xf32>
    %2 = vector.broadcast %1 : vector<1x64xf32> to vector<32x64xf32>
    %3 = arith.mulf %0, %2 : vector<32x64xf32>
    %c0_3 = arith.constant 0 : index
    %c0_4 = arith.constant 0 : index
    %4 = vector.load %arg3[%c0_3, %c0_4] : memref<1x64xf32, #tpu.memory_space<vmem>>, vector<1x64xf32>
    %5 = vector.broadcast %4 : vector<1x64xf32> to vector<32x64xf32>
    %6 = arith.addf %3, %5 : vector<32x64xf32>
    %cst = arith.constant 0.000000e+00 : f32
    %7 = vector.broadcast %cst : f32 to vector<32x64xf32>
    %8 = arith.maximumf %6, %7 : vector<32x64xf32>
    %9 = arith.truncf %8 : vector<32x64xf32> to vector<32x64xbf16>
    %c0_5 = arith.constant 0 : index
    %c0_6 = arith.constant 0 : index
    %10 = vector.load %arg4[%c0_5, %c0_6] : memref<32x64xbf16, #tpu.memory_space<vmem>>, vector<32x64xbf16>
    tpu.vector_store %arg4[%c0_5, %c0_6], %9 {strides = array<i32>} : memref<32x64xbf16, #tpu.memory_space<vmem>>, vector<32x64xbf16>,
    return
  }
  func.func @transform_0(%arg0: i32) -> (i32, i32) {
    %c0_i32 = arith.constant 0 : i32
    %c0_i32_0 = arith.constant 0 : i32
    return %arg0, %c0_i32 : i32, i32
  }
  func.func @transform_1(%arg0: i32) -> (i32, i32) {
    %c0_i32 = arith.constant 0 : i32
    %c0_i32_0 = arith.constant 0 : i32
    %c0_i32_1 = arith.constant 0 : i32
    return %c0_i32, %c0_i32_0 : i32, i32
  }
  func.func @transform_2(%arg0: i32) -> (i32, i32) {
    %c0_i32 = arith.constant 0 : i32
    %c0_i32_0 = arith.constant 0 : i32
    %c0_i32_1 = arith.constant 0 : i32
    return %c0_i32, %c0_i32_0 : i32, i32
  }
  func.func @transform_3(%arg0: i32) -> (i32, i32) {
    %c0_i32 = arith.constant 0 : i32
    %c0_i32_0 = arith.constant 0 : i32
    return %arg0, %c0_i32 : i32, i32
  }
}

module attributes {stable_mosaic.version = 11 : i64} {
  func.func @_mm_kernel_single(%arg0: i32, %arg1: i32, %arg2: memref<256x40xbf16, #tpu.memory_space<vmem>>, %arg3: memref<40x128xbf16, #tpu.memory_space<vmem>>, %arg4: memref<1x128xf32, #tpu.memory_space<vmem>>, %arg5: memref<1x128xf32, #tpu.memory_space<vmem>>, %arg6: memref<1x128xf32, #tpu.memory_space<vmem>>, %arg7: memref<256x128xbf16, #tpu.memory_space<vmem>>) attributes {dimension_semantics = [#tpu.dimension_semantics<parallel>, #tpu.dimension_semantics<parallel>], iteration_bounds = array<i64: 2, 1>, scalar_prefetch = 0 : i64, scratch_operands = 0 : i64, tpu.core_type = #tpu.core_type<tc>, window_params = [{transform_indices = @transform_0, window_bounds = array<i64: 256, 40>}, {transform_indices = @transform_1, window_bounds = array<i64: 40, 128>}, {transform_indices = @transform_2, window_bounds = array<i64: 1, 128>}, {transform_indices = @transform_3, window_bounds = array<i64: 1, 128>}, {transform_indices = @transform_4, window_bounds = array<i64: 1, 128>}, {transform_indices = @transform_5, window_bounds = array<i64: 256, 128>}]} {
    %c0 = arith.constant 0 : index
    %c0_0 = arith.constant 0 : index
    %0 = vector.load %arg2[%c0, %c0_0] : memref<256x40xbf16, #tpu.memory_space<vmem>>, vector<256x40xbf16>
    %c0_1 = arith.constant 0 : index
    %c0_2 = arith.constant 0 : index
    %1 = vector.load %arg3[%c0_1, %c0_2] : memref<40x128xbf16, #tpu.memory_space<vmem>>, vector<40x128xbf16>
    %cst = arith.constant dense<0.000000e+00> : vector<256x128xf32>
    %2 = tpu.matmul %0, %1, %cst {dimension_numbers = #tpu.dot_dimension_numbers<[1], [0], [0], [1], [0, 0, 1, 1], [], []>} : vector<256x40xbf16>, vector<40x128xbf16>, vector<256x128xf32> -> vector<256x128xf32>
    %c0_3 = arith.constant 0 : index
    %c0_4 = arith.constant 0 : index
    %3 = vector.load %arg4[%c0_3, %c0_4] : memref<1x128xf32, #tpu.memory_space<vmem>>, vector<1x128xf32>
    %4 = vector.broadcast %3 : vector<1x128xf32> to vector<256x128xf32>
    %5 = arith.addf %2, %4 : vector<256x128xf32>
    %c0_5 = arith.constant 0 : index
    %c0_6 = arith.constant 0 : index
    %6 = vector.load %arg5[%c0_5, %c0_6] : memref<1x128xf32, #tpu.memory_space<vmem>>, vector<1x128xf32>
    %7 = vector.broadcast %6 : vector<1x128xf32> to vector<256x128xf32>
    %8 = arith.mulf %5, %7 : vector<256x128xf32>
    %c0_7 = arith.constant 0 : index
    %c0_8 = arith.constant 0 : index
    %9 = vector.load %arg6[%c0_7, %c0_8] : memref<1x128xf32, #tpu.memory_space<vmem>>, vector<1x128xf32>
    %10 = vector.broadcast %9 : vector<1x128xf32> to vector<256x128xf32>
    %11 = arith.addf %8, %10 : vector<256x128xf32>
    %cst_9 = arith.constant 0.000000e+00 : f32
    %12 = vector.broadcast %cst_9 : f32 to vector<256x128xf32>
    %13 = arith.maximumf %11, %12 : vector<256x128xf32>
    %14 = arith.truncf %13 : vector<256x128xf32> to vector<256x128xbf16>
    %c0_10 = arith.constant 0 : index
    %c0_11 = arith.constant 0 : index
    %15 = vector.load %arg7[%c0_10, %c0_11] : memref<256x128xbf16, #tpu.memory_space<vmem>>, vector<256x128xbf16>
    tpu.vector_store %arg7[%c0_10, %c0_11], %14 {strides = array<i32>} : memref<256x128xbf16, #tpu.memory_space<vmem>>, vector<256x128xbf16>,
    return
  }
  func.func @transform_0(%arg0: i32, %arg1: i32) -> (i32, i32) {
    %c0_i32 = arith.constant 0 : i32
    %c0_i32_0 = arith.constant 0 : i32
    return %arg0, %c0_i32 : i32, i32
  }
  func.func @transform_1(%arg0: i32, %arg1: i32) -> (i32, i32) {
    %c0_i32 = arith.constant 0 : i32
    %c0_i32_0 = arith.constant 0 : i32
    return %c0_i32, %arg1 : i32, i32
  }
  func.func @transform_2(%arg0: i32, %arg1: i32) -> (i32, i32) {
    %c0_i32 = arith.constant 0 : i32
    %c0_i32_0 = arith.constant 0 : i32
    return %c0_i32, %arg1 : i32, i32
  }
  func.func @transform_3(%arg0: i32, %arg1: i32) -> (i32, i32) {
    %c0_i32 = arith.constant 0 : i32
    %c0_i32_0 = arith.constant 0 : i32
    return %c0_i32, %arg1 : i32, i32
  }
  func.func @transform_4(%arg0: i32, %arg1: i32) -> (i32, i32) {
    %c0_i32 = arith.constant 0 : i32
    %c0_i32_0 = arith.constant 0 : i32
    return %c0_i32, %arg1 : i32, i32
  }
  func.func @transform_5(%arg0: i32, %arg1: i32) -> (i32, i32) {
    %c0_i32 = arith.constant 0 : i32
    return %arg0, %arg1 : i32, i32
  }
}

module attributes {stable_mosaic.version = 11 : i64} {
  func.func @_mm_kernel_single(%arg0: i32, %arg1: i32, %arg2: memref<256x72xbf16, #tpu.memory_space<vmem>>, %arg3: memref<72x128xbf16, #tpu.memory_space<vmem>>, %arg4: memref<1x128xf32, #tpu.memory_space<vmem>>, %arg5: memref<256x128xbf16, #tpu.memory_space<vmem>>, %arg6: memref<256x128xf32, #tpu.memory_space<vmem>>) attributes {dimension_semantics = [#tpu.dimension_semantics<parallel>, #tpu.dimension_semantics<parallel>], iteration_bounds = array<i64: 2, 1>, scalar_prefetch = 0 : i64, scratch_operands = 0 : i64, tpu.core_type = #tpu.core_type<tc>, window_params = [{transform_indices = @transform_0, window_bounds = array<i64: 256, 72>}, {transform_indices = @transform_1, window_bounds = array<i64: 72, 128>}, {transform_indices = @transform_2, window_bounds = array<i64: 1, 128>}, {transform_indices = @transform_3, window_bounds = array<i64: 256, 128>}, {transform_indices = @transform_4, window_bounds = array<i64: 256, 128>}]} {
    %c0 = arith.constant 0 : index
    %c0_0 = arith.constant 0 : index
    %0 = vector.load %arg2[%c0, %c0_0] : memref<256x72xbf16, #tpu.memory_space<vmem>>, vector<256x72xbf16>
    %c0_1 = arith.constant 0 : index
    %c0_2 = arith.constant 0 : index
    %1 = vector.load %arg3[%c0_1, %c0_2] : memref<72x128xbf16, #tpu.memory_space<vmem>>, vector<72x128xbf16>
    %cst = arith.constant dense<0.000000e+00> : vector<256x128xf32>
    %2 = tpu.matmul %0, %1, %cst {dimension_numbers = #tpu.dot_dimension_numbers<[1], [0], [0], [1], [0, 0, 1, 1], [], []>} : vector<256x72xbf16>, vector<72x128xbf16>, vector<256x128xf32> -> vector<256x128xf32>
    %c0_3 = arith.constant 0 : index
    %c0_4 = arith.constant 0 : index
    %3 = vector.load %arg4[%c0_3, %c0_4] : memref<1x128xf32, #tpu.memory_space<vmem>>, vector<1x128xf32>
    %4 = vector.broadcast %3 : vector<1x128xf32> to vector<256x128xf32>
    %5 = arith.addf %2, %4 : vector<256x128xf32>
    %c0_5 = arith.constant 0 : index
    %c0_6 = arith.constant 0 : index
    %6 = vector.load %arg5[%c0_5, %c0_6] : memref<256x128xbf16, #tpu.memory_space<vmem>>, vector<256x128xbf16>
    %7 = arith.extf %6 : vector<256x128xbf16> to vector<256x128xf32>
    %8 = arith.addf %5, %7 : vector<256x128xf32>
    %c0_7 = arith.constant 0 : index
    %c0_8 = arith.constant 0 : index
    %9 = vector.load %arg6[%c0_7, %c0_8] : memref<256x128xf32, #tpu.memory_space<vmem>>, vector<256x128xf32>
    tpu.vector_store %arg6[%c0_7, %c0_8], %8 {strides = array<i32>} : memref<256x128xf32, #tpu.memory_space<vmem>>, vector<256x128xf32>,
    return
  }
  func.func @transform_0(%arg0: i32, %arg1: i32) -> (i32, i32) {
    %c0_i32 = arith.constant 0 : i32
    %c0_i32_0 = arith.constant 0 : i32
    return %arg0, %c0_i32 : i32, i32
  }
  func.func @transform_1(%arg0: i32, %arg1: i32) -> (i32, i32) {
    %c0_i32 = arith.constant 0 : i32
    %c0_i32_0 = arith.constant 0 : i32
    return %c0_i32, %arg1 : i32, i32
  }
  func.func @transform_2(%arg0: i32, %arg1: i32) -> (i32, i32) {
    %c0_i32 = arith.constant 0 : i32
    %c0_i32_0 = arith.constant 0 : i32
    return %c0_i32, %arg1 : i32, i32
  }
  func.func @transform_3(%arg0: i32, %arg1: i32) -> (i32, i32) {
    %c0_i32 = arith.constant 0 : i32
    return %arg0, %arg1 : i32, i32
  }
  func.func @transform_4(%arg0: i32, %arg1: i32) -> (i32, i32) {
    %c0_i32 = arith.constant 0 : i32
    return %arg0, %arg1 : i32, i32
  }
}

module attributes {stable_mosaic.version = 11 : i64} {
  func.func @_mm_kernel_single(%arg0: i32, %arg1: i32, %arg2: memref<256x8xbf16, #tpu.memory_space<vmem>>, %arg3: memref<8x128xbf16, #tpu.memory_space<vmem>>, %arg4: memref<1x128xf32, #tpu.memory_space<vmem>>, %arg5: memref<256x128xbf16, #tpu.memory_space<vmem>>) attributes {dimension_semantics = [#tpu.dimension_semantics<parallel>, #tpu.dimension_semantics<parallel>], iteration_bounds = array<i64: 2, 1>, scalar_prefetch = 0 : i64, scratch_operands = 0 : i64, tpu.core_type = #tpu.core_type<tc>, window_params = [{transform_indices = @transform_0, window_bounds = array<i64: 256, 8>}, {transform_indices = @transform_1, window_bounds = array<i64: 8, 128>}, {transform_indices = @transform_2, window_bounds = array<i64: 1, 128>}, {transform_indices = @transform_3, window_bounds = array<i64: 256, 128>}]} {
    %c0 = arith.constant 0 : index
    %c0_0 = arith.constant 0 : index
    %0 = vector.load %arg2[%c0, %c0_0] : memref<256x8xbf16, #tpu.memory_space<vmem>>, vector<256x8xbf16>
    %c0_1 = arith.constant 0 : index
    %c0_2 = arith.constant 0 : index
    %1 = vector.load %arg3[%c0_1, %c0_2] : memref<8x128xbf16, #tpu.memory_space<vmem>>, vector<8x128xbf16>
    %cst = arith.constant dense<0.000000e+00> : vector<256x128xf32>
    %2 = tpu.matmul %0, %1, %cst {dimension_numbers = #tpu.dot_dimension_numbers<[1], [0], [0], [1], [0, 0, 1, 1], [], []>} : vector<256x8xbf16>, vector<8x128xbf16>, vector<256x128xf32> -> vector<256x128xf32>
    %c0_3 = arith.constant 0 : index
    %c0_4 = arith.constant 0 : index
    %3 = vector.load %arg4[%c0_3, %c0_4] : memref<1x128xf32, #tpu.memory_space<vmem>>, vector<1x128xf32>
    %4 = vector.broadcast %3 : vector<1x128xf32> to vector<256x128xf32>
    %5 = arith.addf %2, %4 : vector<256x128xf32>
    %6 = arith.truncf %5 : vector<256x128xf32> to vector<256x128xbf16>
    %c0_5 = arith.constant 0 : index
    %c0_6 = arith.constant 0 : index
    %7 = vector.load %arg5[%c0_5, %c0_6] : memref<256x128xbf16, #tpu.memory_space<vmem>>, vector<256x128xbf16>
    tpu.vector_store %arg5[%c0_5, %c0_6], %6 {strides = array<i32>} : memref<256x128xbf16, #tpu.memory_space<vmem>>, vector<256x128xbf16>,
    return
  }
  func.func @transform_0(%arg0: i32, %arg1: i32) -> (i32, i32) {
    %c0_i32 = arith.constant 0 : i32
    %c0_i32_0 = arith.constant 0 : i32
    return %arg0, %c0_i32 : i32, i32
  }
  func.func @transform_1(%arg0: i32, %arg1: i32) -> (i32, i32) {
    %c0_i32 = arith.constant 0 : i32
    %c0_i32_0 = arith.constant 0 : i32
    return %c0_i32, %arg1 : i32, i32
  }
  func.func @transform_2(%arg0: i32, %arg1: i32) -> (i32, i32) {
    %c0_i32 = arith.constant 0 : i32
    %c0_i32_0 = arith.constant 0 : i32
    return %c0_i32, %arg1 : i32, i32
  }
  func.func @transform_3(%arg0: i32, %arg1: i32) -> (i32, i32) {
    %c0_i32 = arith.constant 0 : i32
    return %arg0, %arg1 : i32, i32
  }
}

</mosaic_0001>

<llo_original>
// kernel: tile.13
$region0: #{tile.13}
  #allocation0 [shape = 's32[1]{0}', space=sflag, size = 0x4, scoped, tag = 'scoped memory for tile.13']
  %s0 = inlined_call_operand.vmem [shape: f32[4], index: 0, kind: input, shape index: {}]
  %s1 = inlined_call_operand.vmem [shape: f32[16,4], index: 1, kind: output, shape index: {}]
  // Predicated region
  $region2: #{tile.13} parent=0 // pred_check
    _
  $region3: #{tile.13} parent=0 // pred_check_branch
    %3 = sbr.rel (0) target = $region5
  $region4: #{tile.13} parent=0 // pred_region
    _
  $region5: #{tile.13} parent=0 // pred_fallthru
    _
  %v4 = vld [vmem:[%s0] ss:$0 sm:$0xff]
  %5 = vst [vmem:[%s1] sm:$0xff] %v4
  %s6 = scalar_lea.vmem %s1, 8
  %7 = vst [vmem:[%s6] sm:$0xff] %v4

// kernel: tile.14
$region0: #{tile.14}
  %s0 = inlined_call_operand.vmem [shape: f32[16,4], index: 0, kind: input, shape index: {}]
  %s1 = inlined_call_operand.vmem [shape: f32[1,64], index: 1, kind: output, shape index: {}]
  $region1: #{tile.14} parent=0
    #allocation0 [shape = 'u8[4096]{0}', space=vmem, size = 0x1000, scoped, tag = 'scoped mem for output reshape']
    %v2 = vld [vmem:[%s0] sm:$0x1]
    %vm3 = vcmask 31744
    %4 = vst.msk [vmem:[#allocation0] sm:$0x1] %vm3, %v2
    %s5 = scalar_lea.vmem %s0, 15
    %v6 = vld [vmem:[%s5] sm:$0x1]
    %7 = vrot.lane.b32.xlu0 %v6, 60
    %v8 = vpop.permute.xlu0 %7
    %vm9 = vcmask 523744
    %10 = vst.msk [vmem:[#allocation0] sm:$0x1] %vm9, %v8
    %s11 = scalar_lea.vmem %s0, 14
    %v12 = vld [vmem:[%s11] sm:$0x1]
    %13 = vrot.lane.b32.xlu0 %v12, 56
    %v14 = vpop.permute.xlu0 %13
    %vm15 = vcmask 490944
    %16 = vst.msk [vmem:[#allocation0] sm:$0x1] %vm15, %v14
    %s17 = scalar_lea.vmem %s0, 13
    %v18 = vld [vmem:[%s17] sm:$0x1]
    %19 = vrot.lane.b32.xlu0 %v18, 52
    %v20 = vpop.permute.xlu0 %19
    %vm21 = vcmask 458144
    %22 = vst.msk [vmem:[#allocation0] sm:$0x1] %vm21, %v20
    %s23 = scalar_lea.vmem %s0, 12
    %v24 = vld [vmem:[%s23] sm:$0x1]
    %25 = vrot.lane.b32.xlu0 %v24, 48
    %v26 = vpop.permute.xlu0 %25
    %vm27 = vcmask 425344
    %28 = vst.msk [vmem:[#allocation0] sm:$0x1] %vm27, %v26
    %s29 = scalar_lea.vmem %s0, 11
    %v30 = vld [vmem:[%s29] sm:$0x1]
    %31 = vrot.lane.b32.xlu0 %v30, 44
    %v32 = vpop.permute.xlu0 %31
    %vm33 = vcmask 392544
    %34 = vst.msk [vmem:[#allocation0] sm:$0x1] %vm33, %v32
    %s35 = scalar_lea.vmem %s0, 10
    %v36 = vld [vmem:[%s35] sm:$0x1]
    %37 = vrot.lane.b32.xlu0 %v36, 40
    %v38 = vpop.permute.xlu0 %37
    %vm39 = vcmask 359744
    %40 = vst.msk [vmem:[#allocation0] sm:$0x1] %vm39, %v38
    %s41 = scalar_lea.vmem %s0, 9
    %v42 = vld [vmem:[%s41] sm:$0x1]
    %43 = vrot.lane.b32.xlu0 %v42, 36
    %v44 = vpop.permute.xlu0 %43
    %vm45 = vcmask 326944
    %46 = vst.msk [vmem:[#allocation0] sm:$0x1] %vm45, %v44
    %s47 = scalar_lea.vmem %s0, 8
    %v48 = vld [vmem:[%s47] sm:$0x1]
    %49 = vrot.lane.b32.xlu0 %v48, 32
    %v50 = vpop.permute.xlu0 %49
    %vm51 = vcmask 294144
    %52 = vst.msk [vmem:[#allocation0] sm:$0x1] %vm51, %v50
    %s53 = scalar_lea.vmem %s0, 7
    %v54 = vld [vmem:[%s53] sm:$0x1]
    %55 = vrot.lane.b32.xlu0 %v54, 28
    %v56 = vpop.permute.xlu0 %55
    %vm57 = vcmask 261344
    %58 = vst.msk [vmem:[#allocation0] sm:$0x1] %vm57, %v56
    %s59 = scalar_lea.vmem %s0, 6
    %v60 = vld [vmem:[%s59] sm:$0x1]
    %61 = vrot.lane.b32.xlu0 %v60, 24
    %v62 = vpop.permute.xlu0 %61
    %vm63 = vcmask 228544
    %64 = vst.msk [vmem:[#allocation0] sm:$0x1] %vm63, %v62
    %s65 = scalar_lea.vmem %s0, 5
    %v66 = vld [vmem:[%s65] sm:$0x1]
    %67 = vrot.lane.b32.xlu0 %v66, 20
    %v68 = vpop.permute.xlu0 %67
    %vm69 = vcmask 195744
    %70 = vst.msk [vmem:[#allocation0] sm:$0x1] %vm69, %v68
    %s71 = scalar_lea.vmem %s0, 4
    %v72 = vld [vmem:[%s71] sm:$0x1]
    %73 = vrot.lane.b32.xlu0 %v72, 16
    %v74 = vpop.permute.xlu0 %73
    %vm75 = vcmask 162944
    %76 = vst.msk [vmem:[#allocation0] sm:$0x1] %vm75, %v74
    %s77 = scalar_lea.vmem %s0, 3
    %v78 = vld [vmem:[%s77] sm:$0x1]
    %79 = vrot.lane.b32.xlu0 %v78, 12
    %v80 = vpop.permute.xlu0 %79
    %vm81 = vcmask 130144
    %82 = vst.msk [vmem:[#allocation0] sm:$0x1] %vm81, %v80
    %s83 = scalar_lea.vmem %s0, 2
    %v84 = vld [vmem:[%s83] sm:$0x1]
    %85 = vrot.lane.b32.xlu0 %v84, 8
    %v86 = vpop.permute.xlu0 %85
    %vm87 = vcmask 97344
    %88 = vst.msk [vmem:[#allocation0] sm:$0x1] %vm87, %v86
    %s89 = scalar_lea.vmem %s0, 1
    %v90 = vld [vmem:[%s89] sm:$0x1]
    %91 = vrot.lane.b32.xlu0 %v90, 4
    %v92 = vpop.permute.xlu0 %91
    %vm93 = vcmask 64544
    %94 = vst.msk [vmem:[#allocation0] sm:$0x1] %vm93, %v92
    %s96 = sshllo.u32 0, 1
    %v98 = vld [vmem:[#allocation0] sm:%s96]
    %s99 = sshllo.u32 0, 1
    %100 = vst [vmem:[%s1] sm:%s99] %v98

// kernel: wide_block_forward.4
$region0: #{wide_block_forward.4}
  #allocation0 [shape = 'u32[]', space=smem, size = 0x4, offset = 0x4, fixed_abs, tag = 'smem constant byte address 0x4 - core index']
  #allocation1 [shape = 'u32[144,128]{1,0:T(1,128)}', space=vmem, size = 0x12000, scoped, tag = 'internal scratch']
  %s0 = inlined_call_operand.vmem [shape: f32[32,64], index: 0, kind: input, shape index: {}]
  %s1 = inlined_call_operand.vmem [shape: f32[1,64], index: 1, kind: input, shape index: {}]
  %s2 = inlined_call_operand.vmem [shape: f32[1,64], index: 2, kind: input, shape index: {}]
  %s3 = inlined_call_operand.vmem [shape: bf16[32,64], index: 3, kind: output, shape index: {}]
  %s4 = sld [smem:[#allocation0]]
  $region22: #{wide_block_forward.4} parent=0
    _
  %s6 = ssub.s32 1, %s4
  %s7 = scalar_select 0, %s6, %s4
  // Predicated region
  $region2: #{wide_block_forward.4} parent=0 // pred_check
    _
  $region3: #{wide_block_forward.4} parent=0 // pred_check_branch
    %9 = sbr.rel (0) target = $region5
  $region4: #{wide_block_forward.4} parent=0 // pred_region
    _
  $region5: #{wide_block_forward.4} parent=0 // pred_fallthru
    _
  // Predicated region
  $region6: #{wide_block_forward.4} parent=0 // pred_check
    _
  $region7: #{wide_block_forward.4} parent=0 // pred_check_branch
    %11 = sbr.rel (0) target = $region9
  $region8: #{wide_block_forward.4} parent=0 // pred_region
    _
  $region9: #{wide_block_forward.4} parent=0 // pred_fallthru
    _
  // Predicated region
  $region10: #{wide_block_forward.4} parent=0 // pred_check
    _
  $region11: #{wide_block_forward.4} parent=0 // pred_check_branch
    %13 = sbr.rel (0) target = $region13
  $region12: #{wide_block_forward.4} parent=0 // pred_region
    _
  $region13: #{wide_block_forward.4} parent=0 // pred_fallthru
    _
  %v14 = vld [vmem:[%s0] sm:$0xff]
  %v15 = vld [vmem:[%s0 + $0x8] sm:$0xff]
  %v16 = vld [vmem:[%s0 + $0x10] sm:$0xff]
  %v17 = vld [vmem:[%s0 + $0x18] sm:$0xff]
  %v18 = vld [vmem:[%s1] sm:$0x1]
  %v20 = vlaneseq
  %v21 = vshrl.u32 %v20, 7
  %v22 = vsub.s32 0, %v21
  %v23 = vrot.slane %v18, %v22
  %v25 = vmul.f32 %v14, %v23
  %v26 = vmul.f32 %v15, %v23
  %v27 = vmul.f32 %v16, %v23
  %v28 = vmul.f32 %v17, %v23
  %v29 = vld [vmem:[%s2] sm:$0x1]
  %v31 = vlaneseq
  %v32 = vshrl.u32 %v31, 7
  %v33 = vsub.s32 0, %v32
  %v34 = vrot.slane %v29, %v33
  %v36 = vadd.f32 %v25, %v34
  %v37 = vadd.f32 %v26, %v34
  %v38 = vadd.f32 %v27, %v34
  %v39 = vadd.f32 %v28, %v34
  %v40 = vmax.f32 %v36, 0.0
  %v41 = vmax.f32 %v37, 0.0
  %v42 = vmax.f32 %v38, 0.0
  %v43 = vmax.f32 %v39, 0.0
  %v44 = vpack.c.bf16 %v41, %v40
  %v45 = vpack.c.bf16 %v43, %v42
  %v48 = vunpack.c.l.b16 %v44
  %v49 = vunpack.c.h.b16 %v44
  %v50 = vunpack.c.l.b16 %v45
  %v51 = vunpack.c.h.b16 %v45
  %v52 = vpack.c.b16 %v48, %v48
  %v53 = vpack.c.b16 %v49, %v49
  %v54 = vpack.c.b16 %v50, %v50
  %v55 = vpack.c.b16 %v51, %v51
  %vm60 = vcmask 519168
  %61 = vst.msk [vmem:[%s3] sm:$0xf] %vm60, %v52
  %62 = vst.msk [vmem:[%s3 + $0x4] sm:$0xf] %vm60, %v53
  %63 = vst.msk [vmem:[%s3 + $0x8] sm:$0xf] %vm60, %v54
  %64 = vst.msk [vmem:[%s3 + $0xc] sm:$0xf] %vm60, %v55
  // Predicated region
  $region14: #{wide_block_forward.4} parent=0 // pred_check
    _
  $region15: #{wide_block_forward.4} parent=0 // pred_check_branch
    %66 = sbr.rel (0) target = $region17
  $region16: #{wide_block_forward.4} parent=0 // pred_region
    _
  $region17: #{wide_block_forward.4} parent=0 // pred_fallthru
    _
  // Predicated region
  $region18: #{wide_block_forward.4} parent=0 // pred_check
    _
  $region19: #{wide_block_forward.4} parent=0 // pred_check_branch
    %68 = sbr.rel (0) target = $region21
  $region20: #{wide_block_forward.4} parent=0 // pred_region
    _
  $region21: #{wide_block_forward.4} parent=0 // pred_fallthru
    _

// kernel: wide_block_forward.5
$region0: #{wide_block_forward.5}
  #allocation0 [shape = 'u32[]', space=smem, size = 0x4, offset = 0x4, fixed_abs, tag = 'smem constant byte address 0x4 - core index']
  #allocation1 [shape = 'u32[144,128]{1,0:T(1,128)}', space=vmem, size = 0x12000, scoped, tag = 'internal scratch']
  %s0 = inlined_call_operand.vmem [shape: bf16[512,40], index: 0, kind: input, shape index: {}]
  %s1 = inlined_call_operand.vmem [shape: bf16[40,128], index: 1, kind: input, shape index: {}]
  %s2 = inlined_call_operand.vmem [shape: f32[1,128], index: 2, kind: input, shape index: {}]
  %s3 = inlined_call_operand.vmem [shape: f32[1,128], index: 3, kind: input, shape index: {}]
  %s4 = inlined_call_operand.vmem [shape: f32[1,128], index: 4, kind: input, shape index: {}]
  %s5 = inlined_call_operand.vmem [shape: bf16[512,128], index: 5, kind: output, shape index: {}]
  %s6 = sld [smem:[#allocation0]]
  $region53: #{wide_block_forward.5} parent=0
    _
  %s8 = ssub.s32 1, %s6
  %s9 = scalar_select 0, %s8, %s6
  loop: start=0, step=1, limit=4
  $region2: #{wide_block_forward.5} parent=0 // loop_pre_header
    _
  $region3: #{wide_block_forward.5} parent=0 // loop_header
    %s11 = sphi 0, %s15
    %p12 = scmp.ge.s32.totalorder %s11, 4
    %s18 = sphi 0, %s30
    %s19 = sphi 0, %s26
    %s20 = sphi 0, %s18
    %s21 = sphi 0, %s19
    %s22 = sphi 0, %s20
    %s23 = sphi 0, %s21
    %s33 = sphi 0, %s35
    %s36 = sphi 0, %s33
    %s37 = sphi 0, %s36
    %s53 = sphi 0, %s37
    %s59 = sphi 0, %s61
    %s62 = sphi 0, %s59
    %s63 = sphi 0, %s62
    %s79 = sphi 0, %s63
    %s85 = sphi 0, %s87
    %s88 = sphi 0, %s85
    %s89 = sphi 0, %s88
    %s105 = sphi 0, %s89
    %s111 = sphi 0, %s113
    %s114 = sphi 0, %s111
    %s115 = sphi 0, %s114
    %s131 = sphi 0, %s115
    %s137 = sphi 0, %s139
    %s140 = sphi 0, %s137
    %s141 = sphi 0, %s140
    %s157 = sphi 0, %s141
    %s165 = sphi 0, %s167
    %s168 = sphi 0, %s165
    %s169 = sphi 0, %s168
    %s185 = sphi 0, %s169
  $region4: #{wide_block_forward.5} parent=0 // loop_header_branch
    %14 = sbr.rel (%p12) target = $region8
  $region5: #{wide_block_forward.5} parent=0 // loop_body
    %s16 = ssub.s32 %s11, 1
    %s17 = ssub.s32 %s11, 2
    %s24 = sadd.s32 1, %s19
    %p25 = scmp.ge.s32.totalorder %s24, 1
    %s26 = scalar_select %p25, 0, %s24
    %s27 = sadd.s32 1, %s18
    %s28 = scalar_select %p25, %s27, %s18
    %p29 = scmp.ge.s32.totalorder %s28, 2
    %s30 = scalar_select %p29, 0, %s28
    %s31 = ssub.s32 %s18, %s30
    %p32 = scmp.eq.s32.totalorder %s31, 0
    %s34 = sadd.s32 %s33, 1
    %s35 = scalar_select %p32, %s33, %s34
    %p38 = pneg %p32
    %p39 = scmp.eq.s32.totalorder %s11, 1
    %p40 = por %p38, %p39
    %p41 = scmp.ne.s32.totalorder %s33, %s36
    %p42 = scmp.eq.s32.totalorder %s11, 0
    %p43 = por %p41, %p42
    %p44 = scmp.ne.s32.totalorder %s33, %s36
    %p45 = scmp.eq.s32.totalorder %s16, 1
    %p46 = por %p44, %p45
    %p47 = scmp.ne.s32.totalorder %s36, %s37
    %p48 = scmp.eq.s32.totalorder %s16, 0
    %p49 = por %p47, %p48
    %p50 = scmp.ne.s32.totalorder %s36, %s37
    %p51 = scmp.eq.s32.totalorder %s17, 1
    %p52 = por %p50, %p51
    %p54 = scmp.ne.s32.totalorder %s37, %s53
    %p55 = scmp.eq.s32.totalorder %s17, 0
    %p56 = por %p54, %p55
    %s57 = ssub.s32 %s19, %s26
    %p58 = scmp.eq.s32.totalorder %s57, 0
    %s60 = sadd.s32 %s59, 1
    %s61 = scalar_select %p58, %s59, %s60
    %p64 = pneg %p58
    %p65 = scmp.eq.s32.totalorder %s11, 1
    %p66 = por %p64, %p65
    %p67 = scmp.ne.s32.totalorder %s59, %s62
    %p68 = scmp.eq.s32.totalorder %s11, 0
    %p69 = por %p67, %p68
    %p70 = scmp.ne.s32.totalorder %s59, %s62
    %p71 = scmp.eq.s32.totalorder %s16, 1
    %p72 = por %p70, %p71
    %p73 = scmp.ne.s32.totalorder %s62, %s63
    %p74 = scmp.eq.s32.totalorder %s16, 0
    %p75 = por %p73, %p74
    %p76 = scmp.ne.s32.totalorder %s62, %s63
    %p77 = scmp.eq.s32.totalorder %s17, 1
    %p78 = por %p76, %p77
    %p80 = scmp.ne.s32.totalorder %s63, %s79
    %p81 = scmp.eq.s32.totalorder %s17, 0
    %p82 = por %p80, %p81
    %s83 = ssub.s32 %s19, %s26
    %p84 = scmp.eq.s32.totalorder %s83, 0
    %s86 = sadd.s32 %s85, 1
    %s87 = scalar_select %p84, %s85, %s86
    %p90 = pneg %p84
    %p91 = scmp.eq.s32.totalorder %s11, 1
    %p92 = por %p90, %p91
    %p93 = scmp.ne.s32.totalorder %s85, %s88
    %p94 = scmp.eq.s32.totalorder %s11, 0
    %p95 = por %p93, %p94
    %p96 = scmp.ne.s32.totalorder %s85, %s88
    %p97 = scmp.eq.s32.totalorder %s16, 1
    %p98 = por %p96, %p97
    %p99 = scmp.ne.s32.totalorder %s88, %s89
    %p100 = scmp.eq.s32.totalorder %s16, 0
    %p101 = por %p99, %p100
    %p102 = scmp.ne.s32.totalorder %s88, %s89
    %p103 = scmp.eq.s32.totalorder %s17, 1
    %p104 = por %p102, %p103
    %p106 = scmp.ne.s32.totalorder %s89, %s105
    %p107 = scmp.eq.s32.totalorder %s17, 0
    %p108 = por %p106, %p107
    %s109 = ssub.s32 %s19, %s26
    %p110 = scmp.eq.s32.totalorder %s109, 0
    %s112 = sadd.s32 %s111, 1
    %s113 = scalar_select %p110, %s111, %s112
    %p116 = pneg %p110
    %p117 = scmp.eq.s32.totalorder %s11, 1
    %p118 = por %p116, %p117
    %p119 = scmp.ne.s32.totalorder %s111, %s114
    %p120 = scmp.eq.s32.totalorder %s11, 0
    %p121 = por %p119, %p120
    %p122 = scmp.ne.s32.totalorder %s111, %s114
    %p123 = scmp.eq.s32.totalorder %s16, 1
    %p124 = por %p122, %p123
    %p125 = scmp.ne.s32.totalorder %s114, %s115
    %p126 = scmp.eq.s32.totalorder %s16, 0
    %p127 = por %p125, %p126
    %p128 = scmp.ne.s32.totalorder %s114, %s115
    %p129 = scmp.eq.s32.totalorder %s17, 1
    %p130 = por %p128, %p129
    %p132 = scmp.ne.s32.totalorder %s115, %s131
    %p133 = scmp.eq.s32.totalorder %s17, 0
    %p134 = por %p132, %p133
    %s135 = ssub.s32 %s19, %s26
    %p136 = scmp.eq.s32.totalorder %s135, 0
    %s138 = sadd.s32 %s137, 1
    %s139 = scalar_select %p136, %s137, %s138
    %p142 = pneg %p136
    %p143 = scmp.eq.s32.totalorder %s11, 1
    %p144 = por %p142, %p143
    %p145 = scmp.ne.s32.totalorder %s137, %s140
    %p146 = scmp.eq.s32.totalorder %s11, 0
    %p147 = por %p145, %p146
    %p148 = scmp.ne.s32.totalorder %s137, %s140
    %p149 = scmp.eq.s32.totalorder %s16, 1
    %p150 = por %p148, %p149
    %p151 = scmp.ne.s32.totalorder %s140, %s141
    %p152 = scmp.eq.s32.totalorder %s16, 0
    %p153 = por %p151, %p152
    %p154 = scmp.ne.s32.totalorder %s140, %s141
    %p155 = scmp.eq.s32.totalorder %s17, 1
    %p156 = por %p154, %p155
    %p158 = scmp.ne.s32.totalorder %s141, %s157
    %p159 = scmp.eq.s32.totalorder %s17, 0
    %p160 = por %p158, %p159
    %s161 = ssub.s32 %s18, %s30
    %s162 = ssub.s32 %s19, %s26
    %s163 = sor.u32 %s161, %s162
    %p164 = scmp.eq.s32.totalorder %s163, 0
    %s166 = sadd.s32 %s165, 1
    %s167 = scalar_select %p164, %s165, %s166
    %p170 = pneg %p164
    %p171 = scmp.eq.s32.totalorder %s11, 1
    %p172 = por %p170, %p171
    %p173 = scmp.ne.s32.totalorder %s165, %s168
    %p174 = scmp.eq.s32.totalorder %s11, 0
    %p175 = por %p173, %p174
    %p176 = scmp.ne.s32.totalorder %s165, %s168
    %p177 = scmp.eq.s32.totalorder %s16, 1
    %p178 = por %p176, %p177
    %p179 = scmp.ne.s32.totalorder %s168, %s169
    %p180 = scmp.eq.s32.totalorder %s16, 0
    %p181 = por %p179, %p180
    %p182 = scmp.ne.s32.totalorder %s168, %s169
    %p183 = scmp.eq.s32.totalorder %s17, 1
    %p184 = por %p182, %p183
    %p186 = scmp.ne.s32.totalorder %s169, %s185
    %p187 = scmp.eq.s32.totalorder %s17, 0
    %p188 = por %p186, %p187
    %p189 = scmp.le.s32.totalorder 1, %s11
    %p190 = scmp.lt.s32.totalorder %s11, 3
    %p191 = pnand %p189, %p190
    %p192 = pneg %p191
    // Predicated region
    $region9: #{wide_block_forward.5} parent=5 // pred_check
      _
    $region10: #{wide_block_forward.5} parent=5 // pred_check_branch
      %194 = sbr.rel (%p191) target = $region12
    $region11: #{wide_block_forward.5} parent=5 // pred_region
      %s195 = ssub.s32 %s11, 1
      // Predicated region
      $region13: #{wide_block_forward.5} parent=11 // pred_check
        %p196 = pneg %p75
      $region14: #{wide_block_forward.5} parent=11 // pred_check_branch
        %198 = sbr.rel (%p196) target = $region16
      $region15: #{wide_block_forward.5} parent=11 // pred_region
        %p199 = scmp.lt.s32.totalorder %s21, 0
        %s200 = scalar_select %p199, %s21, 0
        %s201 = smul.addr %s200, 4
        %s202 = scalar_lea.vmem %s1, %s201
      $region16: #{wide_block_forward.5} parent=11 // pred_fallthru
        _
      // Predicated region
      $region17: #{wide_block_forward.5} parent=11 // pred_check
        %p203 = pneg %p101
      $region18: #{wide_block_forward.5} parent=11 // pred_check_branch
        %205 = sbr.rel (%p203) target = $region20
      $region19: #{wide_block_forward.5} parent=11 // pred_region
        %p206 = scmp.lt.s32.totalorder %s21, 0
        %s207 = scalar_select %p206, %s21, 0
        %s208 = scalar_lea.vmem %s2, %s207
      $region20: #{wide_block_forward.5} parent=11 // pred_fallthru
        _
      // Predicated region
      $region21: #{wide_block_forward.5} parent=11 // pred_check
        %p209 = pneg %p127
      $region22: #{wide_block_forward.5} parent=11 // pred_check_branch
        %211 = sbr.rel (%p209) target = $region24
      $region23: #{wide_block_forward.5} parent=11 // pred_region
        %p212 = scmp.lt.s32.totalorder %s21, 0
        %s213 = scalar_select %p212, %s21, 0
        %s214 = scalar_lea.vmem %s3, %s213
      $region24: #{wide_block_forward.5} parent=11 // pred_fallthru
        _
      // Predicated region
      $region25: #{wide_block_forward.5} parent=11 // pred_check
        %p215 = pneg %p153
      $region26: #{wide_block_forward.5} parent=11 // pred_check_branch
        %217 = sbr.rel (%p215) target = $region28
      $region27: #{wide_block_forward.5} parent=11 // pred_region
        %p218 = scmp.lt.s32.totalorder %s21, 0
        %s219 = scalar_select %p218, %s21, 0
        %s220 = scalar_lea.vmem %s4, %s219
      $region28: #{wide_block_forward.5} parent=11 // pred_fallthru
        _
    $region12: #{wide_block_forward.5} parent=5 // pred_fallthru
      _
    %p221 = scmp.lt.s32.totalorder %s11, 2
    // Predicated region
    $region29: #{wide_block_forward.5} parent=5 // pred_check
      %p222 = pneg %p221
    $region30: #{wide_block_forward.5} parent=5 // pred_check_branch
      %224 = sbr.rel (%p222) target = $region32
    $region31: #{wide_block_forward.5} parent=5 // pred_region
      // Predicated region
      $region33: #{wide_block_forward.5} parent=31 // pred_check
        %p225 = pneg %p43
      $region34: #{wide_block_forward.5} parent=31 // pred_check_branch
        %227 = sbr.rel (%p225) target = $region36
      $region35: #{wide_block_forward.5} parent=31 // pred_region
        %s228 = smul.u32 32, %s18
        %p229 = scmp.lt.s32.totalorder %s228, 63
        %s230 = scalar_select %p229, %s228, 63
        %s231 = smul.addr %s230, 4
        %s232 = scalar_lea.vmem %s0, %s231
        %s233 = smul.u32 32, %s18
      $region36: #{wide_block_forward.5} parent=31 // pred_fallthru
        _
    $region32: #{wide_block_forward.5} parent=5 // pred_fallthru
      _
    %p234 = scmp.le.s32.totalorder 1, %s11
    %p235 = scmp.lt.s32.totalorder %s11, 3
    %p236 = pnand %p234, %p235
    %p237 = pneg %p236
    // Predicated region
    $region37: #{wide_block_forward.5} parent=5 // pred_check
      _
    $region38: #{wide_block_forward.5} parent=5 // pred_check_branch
      %239 = sbr.rel (%p236) target = $region40
    $region39: #{wide_block_forward.5} parent=5 // pred_region
      %s240 = ssub.s32 %s11, 1
      %s241 = smul.u32 32, %s20
      %p242 = scmp.lt.s32.totalorder %s241, 63
      %s243 = scalar_select %p242, %s241, 63
      %s244 = smul.addr %s243, 4
      %s245 = scalar_lea.vmem %s0, %s244
      %p246 = pneg %p49
      %p247 = pneg %p46
      %p248 = scmp.lt.s32.totalorder %s21, 0
      %s249 = scalar_select %p248, %s21, 0
      %s250 = smul.addr %s249, 4
      %s251 = scalar_lea.vmem %s1, %s250
      %p252 = pneg %p75
      %p253 = pneg %p72
      %p254 = scmp.lt.s32.totalorder %s21, 0
      %s255 = scalar_select %p254, %s21, 0
      %s256 = scalar_lea.vmem %s2, %s255
      %p257 = pneg %p101
      %p258 = pneg %p98
      %p259 = scmp.lt.s32.totalorder %s21, 0
      %s260 = scalar_select %p259, %s21, 0
      %s261 = scalar_lea.vmem %s3, %s260
      %p262 = pneg %p127
      %p263 = pneg %p124
      %p264 = scmp.lt.s32.totalorder %s21, 0
      %s265 = scalar_select %p264, %s21, 0
      %s266 = scalar_lea.vmem %s4, %s265
      %p267 = pneg %p153
      %p268 = pneg %p150
      %p269 = pneg %p181
      %p270 = pneg %p178
      %s271 = smul.u32 32, %s20
      %p272 = scmp.lt.s32.totalorder %s271, 63
      %s273 = scalar_select %p272, %s271, 63
      %p274 = scmp.lt.s32.totalorder %s21, 0
      %s275 = scalar_select %p274, %s21, 0
      %s276 = sadd.s32 %s275, %s273
      %s277 = smul.addr %s276, 4
      %s278 = scalar_lea.vmem %s5, %s277
      %s279 = smul.u32 32, %s20
      %p280 = scmp.lt.s32.totalorder %s279, 63
      %s281 = scalar_select %p280, %s279, 63
      %s282 = smul.addr %s281, 4
      %s283 = scalar_lea.vmem %s0, %s282
      %s284 = smul.u32 32, %s20
      %p285 = scmp.lt.s32.totalorder %s21, 0
      %s286 = scalar_select %p285, %s21, 0
      %s287 = smul.addr %s286, 4
      %s288 = scalar_lea.vmem %s1, %s287
      %p289 = scmp.lt.s32.totalorder %s21, 0
      %s290 = scalar_select %p289, %s21, 0
      %s291 = scalar_lea.vmem %s2, %s290
      %p292 = scmp.lt.s32.totalorder %s21, 0
      %s293 = scalar_select %p292, %s21, 0
      %s294 = scalar_lea.vmem %s3, %s293
      %p295 = scmp.lt.s32.totalorder %s21, 0
      %s296 = scalar_select %p295, %s21, 0
      %s297 = scalar_lea.vmem %s4, %s296
      %s298 = smul.u32 32, %s20
      %p299 = scmp.lt.s32.totalorder %s298, 63
      %s300 = scalar_select %p299, %s298, 63
      %p301 = scmp.lt.s32.totalorder %s21, 0
      %s302 = scalar_select %p301, %s21, 0
      %s303 = sadd.s32 %s302, %s300
      %s304 = smul.addr %s303, 4
      %s305 = scalar_lea.vmem %s5, %s304
      %s306 = smul.u32 32, %s20
      %v308 = vld [vmem:[%s283] sm:$0xf]
      %v309 = vld [vmem:[%s283 + $0x4] sm:$0xf]
      %v310 = vld [vmem:[%s283 + $0x8] sm:$0xf]
      %v311 = vld [vmem:[%s283 + $0xc] sm:$0xf]
      %v312 = vld [vmem:[%s283 + $0x10] sm:$0xf]
      %v313 = vld [vmem:[%s283 + $0x14] sm:$0xf]
      %v314 = vld [vmem:[%s283 + $0x18] sm:$0xf]
      %v315 = vld [vmem:[%s283 + $0x1c] sm:$0xf]
      %v316 = vld [vmem:[%s283 + $0x20] sm:$0xf]
      %v317 = vld [vmem:[%s283 + $0x24] sm:$0xf]
      %v318 = vld [vmem:[%s283 + $0x28] sm:$0xf]
      %v319 = vld [vmem:[%s283 + $0x2c] sm:$0xf]
      %v320 = vld [vmem:[%s283 + $0x30] sm:$0xf]
      %v321 = vld [vmem:[%s283 + $0x34] sm:$0xf]
      %v322 = vld [vmem:[%s283 + $0x38] sm:$0xf]
      %v323 = vld [vmem:[%s283 + $0x3c] sm:$0xf]
      %v324 = vld [vmem:[%s283 + $0x40] sm:$0xf]
      %v325 = vld [vmem:[%s283 + $0x44] sm:$0xf]
      %v326 = vld [vmem:[%s283 + $0x48] sm:$0xf]
      %v327 = vld [vmem:[%s283 + $0x4c] sm:$0xf]
      %v328 = vld [vmem:[%s283 + $0x50] sm:$0xf]
      %v329 = vld [vmem:[%s283 + $0x54] sm:$0xf]
      %v330 = vld [vmem:[%s283 + $0x58] sm:$0xf]
      %v331 = vld [vmem:[%s283 + $0x5c] sm:$0xf]
      %v332 = vld [vmem:[%s283 + $0x60] sm:$0xf]
      %v333 = vld [vmem:[%s283 + $0x64] sm:$0xf]
      %v334 = vld [vmem:[%s283 + $0x68] sm:$0xf]
      %v335 = vld [vmem:[%s283 + $0x6c] sm:$0xf]
      %v336 = vld [vmem:[%s283 + $0x70] sm:$0xf]
      %v337 = vld [vmem:[%s283 + $0x74] sm:$0xf]
      %v338 = vld [vmem:[%s283 + $0x78] sm:$0xf]
      %v339 = vld [vmem:[%s283 + $0x7c] sm:$0xf]
      %v340 = vld [vmem:[%s288] sm:$0xf]
      %v341 = vld [vmem:[%s288 + $0x4] sm:$0xf]
      %v342 = vld [vmem:[%s288 + $0x8] sm:$0xf]
      %v343 = vld [vmem:[%s288 + $0xc] sm:$0xf]
      %v344 = vld [vmem:[%s288 + $0x10] sm:$0xf]
      %v345 = vld [vmem:[%s291] sm:$0x1]
      %v347 = vlaneseq
      %v348 = vshrl.u32 %v347, 7
      %v349 = vsub.s32 0, %v348
      %v350 = vrot.slane %v345, %v349
      %v384 = vunpack.c.l.b16 %v308
      %v385 = vunpack.c.l.b16 %v309
      %v386 = vunpack.c.l.b16 %v310
      %v387 = vunpack.c.l.b16 %v311
      %v388 = vunpack.c.l.b16 %v312
      %v389 = vunpack.c.l.b16 %v313
      %v390 = vunpack.c.l.b16 %v314
      %v391 = vunpack.c.l.b16 %v315
      %v392 = vunpack.c.l.b16 %v316
      %v393 = vunpack.c.l.b16 %v317
      %v394 = vunpack.c.l.b16 %v318
      %v395 = vunpack.c.l.b16 %v319
      %v396 = vunpack.c.l.b16 %v320
      %v397 = vunpack.c.l.b16 %v321
      %v398 = vunpack.c.l.b16 %v322
      %v399 = vunpack.c.l.b16 %v323
      %v400 = vunpack.c.l.b16 %v324
      %v401 = vunpack.c.l.b16 %v325
      %v402 = vunpack.c.l.b16 %v326
      %v403 = vunpack.c.l.b16 %v327
      %v404 = vunpack.c.l.b16 %v328
      %v405 = vunpack.c.l.b16 %v329
      %v406 = vunpack.c.l.b16 %v330
      %v407 = vunpack.c.l.b16 %v331
      %v408 = vunpack.c.l.b16 %v332
      %v409 = vunpack.c.l.b16 %v333
      %v410 = vunpack.c.l.b16 %v334
      %v411 = vunpack.c.l.b16 %v335
      %v412 = vunpack.c.l.b16 %v336
      %v413 = vunpack.c.l.b16 %v337
      %v414 = vunpack.c.l.b16 %v338
      %v415 = vunpack.c.l.b16 %v339
      %v416 = vpack.c.b16 %v385, %v384
      %v417 = vpack.c.b16 %v387, %v386
      %v418 = vpack.c.b16 %v389, %v388
      %v419 = vpack.c.b16 %v391, %v390
      %v420 = vpack.c.b16 %v393, %v392
      %v421 = vpack.c.b16 %v395, %v394
      %v422 = vpack.c.b16 %v397, %v396
      %v423 = vpack.c.b16 %v399, %v398
      %v424 = vpack.c.b16 %v401, %v400
      %v425 = vpack.c.b16 %v403, %v402
      %v426 = vpack.c.b16 %v405, %v404
      %v427 = vpack.c.b16 %v407, %v406
      %v428 = vpack.c.b16 %v409, %v408
      %v429 = vpack.c.b16 %v411, %v410
      %v430 = vpack.c.b16 %v413, %v412
      %v431 = vpack.c.b16 %v415, %v414
      %v437 = vunpack.c.l.b16 %v340
      %v438 = vunpack.c.l.b16 %v341
      %v439 = vunpack.c.l.b16 %v342
      %v440 = vunpack.c.l.b16 %v343
      %v441 = vunpack.c.l.b16 %v344
      %v442 = vpack.c.b16 %v438, %v437
      %v443 = vpack.c.b16 %v440, %v439
      %v444 = vpack.c.b16 %v441, %v441
      %vm447 = vcmask 326656
      %v449 = vsel %vm447, %v416, 0
      %v452 = vsel %vm447, %v417, 0
      %v455 = vsel %vm447, %v418, 0
      %v458 = vsel %vm447, %v419, 0
      %v461 = vsel %vm447, %v420, 0
      %v464 = vsel %vm447, %v421, 0
      %v467 = vsel %vm447, %v422, 0
      %v470 = vsel %vm447, %v423, 0
      %v473 = vsel %vm447, %v424, 0
      %v476 = vsel %vm447, %v425, 0
      %v479 = vsel %vm447, %v426, 0
      %v482 = vsel %vm447, %v427, 0
      %v485 = vsel %vm447, %v428, 0
      %v488 = vsel %vm447, %v429, 0
      %v491 = vsel %vm447, %v430, 0
      %v494 = vsel %vm447, %v431, 0
      %vm496 = vcmask 1043456
      %v498 = vsel %vm496, %v444, 0
      %500 = vmatprep.subr.bf16.mxu0 0
      %501 = vmatpush1.bf16.msra.mxu0 %v442
      %502 = vmatprep.subr.bf16.mxu0 0
      %503 = vmatpush1.bf16.msra.mxu0 %v443
      %504 = vmatprep.subr.bf16.mxu0 0
      %505 = vmatpush1.bf16.msra.mxu0 %v498
      %506 = vmatprep.subr.bf16.mxu0 0
      %507 = vmatpush1.bf16.msra.mxu0 0
      %508 = vmatprep.subr.bf16.mxu0 0
      %509 = vmatpush1.bf16.msra.mxu0 0
      %510 = vmatprep.subr.bf16.mxu0 0
      %511 = vmatpush1.bf16.msra.mxu0 0
      %512 = vmatprep.subr.bf16.mxu0 0
      %513 = vmatpush1.bf16.msra.mxu0 0
      %514 = vmatprep.subr.bf16.mxu0 0
      %515 = vmatpush1.bf16.msra.mxu0 0
      %516 = vmatprep.subr.bf16.mxu0 0
      %517 = vmatpush1.bf16.msra.mxu0 0
      %518 = vmatprep.subr.bf16.mxu0 0
      %519 = vmatpush1.bf16.msra.mxu0 0
      %520 = vmatprep.subr.bf16.mxu0 0
      %521 = vmatpush1.bf16.msra.mxu0 0
      %522 = vmatprep.subr.bf16.mxu0 0
      %523 = vmatpush1.bf16.msra.mxu0 0
      %524 = vmatprep.subr.bf16.mxu0 0
      %525 = vmatpush1.bf16.msra.mxu0 0
      %526 = vmatprep.subr.bf16.mxu0 0
      %527 = vmatpush1.bf16.msra.mxu0 0
      %528 = vmatprep.subr.bf16.mxu0 0
      %529 = vmatpush1.bf16.msra.mxu0 0
      %530 = vmatprep.subr.bf16.mxu0 0
      %531 = vmatpush1.bf16.msra.mxu0 0
      %532 = vmatprep.mubr.bf16.mxu0 0
      %533 = vmatmul.mubr.bf16.gmra.mrb[0].mxu0 %v449
      %v534 = vpop.f32.mrb[0].mxu0
      %v535 = vadd.f32 %v350, %v534
      %v536 = vpop.f32.mrb[0].mxu0
      %v537 = vpop.f32.mrb[0].mxu0
      %v538 = vadd.f32 %v350, %v537
      %v539 = vpop.f32.mrb[0].mxu0
      %540 = vmatprep.mubr.bf16.mxu0 0
      %541 = vmatmul.mubr.bf16.gmra.mrb[0].mxu0 %v452
      %v542 = vpop.f32.mrb[0].mxu0
      %v543 = vadd.f32 %v350, %v542
      %v544 = vpop.f32.mrb[0].mxu0
      %v545 = vpop.f32.mrb[0].mxu0
      %v546 = vadd.f32 %v350, %v545
      %v547 = vpop.f32.mrb[0].mxu0
      %548 = vmatprep.mubr.bf16.mxu0 0
      %549 = vmatmul.mubr.bf16.gmra.mrb[0].mxu0 %v455
      %v550 = vpop.f32.mrb[0].mxu0
      %v551 = vadd.f32 %v350, %v550
      %v552 = vpop.f32.mrb[0].mxu0
      %v553 = vpop.f32.mrb[0].mxu0
      %v554 = vadd.f32 %v350, %v553
      %v555 = vpop.f32.mrb[0].mxu0
      %556 = vmatprep.mubr.bf16.mxu0 0
      %557 = vmatmul.mubr.bf16.gmra.mrb[0].mxu0 %v458
      %v558 = vpop.f32.mrb[0].mxu0
      %v559 = vadd.f32 %v350, %v558
      %v560 = vpop.f32.mrb[0].mxu0
      %v561 = vpop.f32.mrb[0].mxu0
      %v562 = vadd.f32 %v350, %v561
      %v563 = vpop.f32.mrb[0].mxu0
      %564 = vmatprep.mubr.bf16.mxu0 0
      %565 = vmatmul.mubr.bf16.gmra.mrb[0].mxu0 %v461
      %v566 = vpop.f32.mrb[0].mxu0
      %v567 = vadd.f32 %v350, %v566
      %v568 = vpop.f32.mrb[0].mxu0
      %v569 = vpop.f32.mrb[0].mxu0
      %v570 = vadd.f32 %v350, %v569
      %v571 = vpop.f32.mrb[0].mxu0
      %572 = vmatprep.mubr.bf16.mxu0 0
      %573 = vmatmul.mubr.bf16.gmra.mrb[0].mxu0 %v464
      %v574 = vpop.f32.mrb[0].mxu0
      %v575 = vadd.f32 %v350, %v574
      %v576 = vpop.f32.mrb[0].mxu0
      %v577 = vpop.f32.mrb[0].mxu0
      %v578 = vadd.f32 %v350, %v577
      %v579 = vpop.f32.mrb[0].mxu0
      %580 = vmatprep.mubr.bf16.mxu0 0
      %581 = vmatmul.mubr.bf16.gmra.mrb[0].mxu0 %v467
      %v582 = vpop.f32.mrb[0].mxu0
      %v583 = vadd.f32 %v350, %v582
      %v584 = vpop.f32.mrb[0].mxu0
      %v585 = vpop.f32.mrb[0].mxu0
      %v586 = vadd.f32 %v350, %v585
      %v587 = vpop.f32.mrb[0].mxu0
      %588 = vmatprep.mubr.bf16.mxu0 0
      %589 = vmatmul.mubr.bf16.gmra.mrb[0].mxu0 %v470
      %v590 = vpop.f32.mrb[0].mxu0
      %v591 = vadd.f32 %v350, %v590
      %v592 = vpop.f32.mrb[0].mxu0
      %v593 = vpop.f32.mrb[0].mxu0
      %v594 = vadd.f32 %v350, %v593
      %v595 = vpop.f32.mrb[0].mxu0
      %596 = vmatprep.mubr.bf16.mxu0 0
      %597 = vmatmul.mubr.bf16.gmra.mrb[0].mxu0 %v473
      %v598 = vpop.f32.mrb[0].mxu0
      %v599 = vadd.f32 %v350, %v598
      %v600 = vpop.f32.mrb[0].mxu0
      %v601 = vpop.f32.mrb[0].mxu0
      %v602 = vadd.f32 %v350, %v601
      %v603 = vpop.f32.mrb[0].mxu0
      %604 = vmatprep.mubr.bf16.mxu0 0
      %605 = vmatmul.mubr.bf16.gmra.mrb[0].mxu0 %v476
      %v606 = vpop.f32.mrb[0].mxu0
      %v607 = vadd.f32 %v350, %v606
      %v608 = vpop.f32.mrb[0].mxu0
      %v609 = vpop.f32.mrb[0].mxu0
      %v610 = vadd.f32 %v350, %v609
      %v611 = vpop.f32.mrb[0].mxu0
      %612 = vmatprep.mubr.bf16.mxu0 0
      %613 = vmatmul.mubr.bf16.gmra.mrb[0].mxu0 %v479
      %v614 = vpop.f32.mrb[0].mxu0
      %v615 = vadd.f32 %v350, %v614
      %v616 = vpop.f32.mrb[0].mxu0
      %v617 = vpop.f32.mrb[0].mxu0
      %v618 = vadd.f32 %v350, %v617
      %v619 = vpop.f32.mrb[0].mxu0
      %620 = vmatprep.mubr.bf16.mxu0 0
      %621 = vmatmul.mubr.bf16.gmra.mrb[0].mxu0 %v482
      %v622 = vpop.f32.mrb[0].mxu0
      %v623 = vadd.f32 %v350, %v622
      %v624 = vpop.f32.mrb[0].mxu0
      %v625 = vpop.f32.mrb[0].mxu0
      %v626 = vadd.f32 %v350, %v625
      %v627 = vpop.f32.mrb[0].mxu0
      %628 = vmatprep.mubr.bf16.mxu0 0
      %629 = vmatmul.mubr.bf16.gmra.mrb[0].mxu0 %v485
      %v630 = vpop.f32.mrb[0].mxu0
      %v631 = vadd.f32 %v350, %v630
      %v632 = vpop.f32.mrb[0].mxu0
      %v633 = vpop.f32.mrb[0].mxu0
      %v634 = vadd.f32 %v350, %v633
      %v635 = vpop.f32.mrb[0].mxu0
      %636 = vmatprep.mubr.bf16.mxu0 0
      %637 = vmatmul.mubr.bf16.gmra.mrb[0].mxu0 %v488
      %v638 = vpop.f32.mrb[0].mxu0
      %v639 = vadd.f32 %v350, %v638
      %v640 = vpop.f32.mrb[0].mxu0
      %v641 = vpop.f32.mrb[0].mxu0
      %v642 = vadd.f32 %v350, %v641
      %v643 = vpop.f32.mrb[0].mxu0
      %644 = vmatprep.mubr.bf16.mxu0 0
      %645 = vmatmul.mubr.bf16.gmra.mrb[0].mxu0 %v491
      %v646 = vpop.f32.mrb[0].mxu0
      %v647 = vadd.f32 %v350, %v646
      %v648 = vpop.f32.mrb[0].mxu0
      %v649 = vpop.f32.mrb[0].mxu0
      %v650 = vadd.f32 %v350, %v649
      %v651 = vpop.f32.mrb[0].mxu0
      %652 = vmatprep.mubr.bf16.mxu0 0
      %653 = vmatmul.mubr.bf16.gmra.mrb[0].mxu0 %v494
      %v654 = vpop.f32.mrb[0].mxu0
      %v655 = vadd.f32 %v350, %v654
      %v656 = vpop.f32.mrb[0].mxu0
      %v657 = vpop.f32.mrb[0].mxu0
      %v658 = vadd.f32 %v350, %v657
      %v659 = vpop.f32.mrb[0].mxu0
      %660 = vdwg.mxu0
      %v661 = vld [vmem:[%s294] sm:$0x1]
      %v663 = vlaneseq
      %v664 = vshrl.u32 %v663, 7
      %v665 = vsub.s32 0, %v664
      %v666 = vrot.slane %v661, %v665
      %v668 = vmul.f32 %v535, %v666
      %v669 = vmul.f32 %v538, %v666
      %v670 = vmul.f32 %v543, %v666
      %v671 = vmul.f32 %v546, %v666
      %v672 = vmul.f32 %v551, %v666
      %v673 = vmul.f32 %v554, %v666
      %v674 = vmul.f32 %v559, %v666
      %v675 = vmul.f32 %v562, %v666
      %v676 = vmul.f32 %v567, %v666
      %v677 = vmul.f32 %v570, %v666
      %v678 = vmul.f32 %v575, %v666
      %v679 = vmul.f32 %v578, %v666
      %v680 = vmul.f32 %v583, %v666
      %v681 = vmul.f32 %v586, %v666
      %v682 = vmul.f32 %v591, %v666
      %v683 = vmul.f32 %v594, %v666
      %v684 = vmul.f32 %v599, %v666
      %v685 = vmul.f32 %v602, %v666
      %v686 = vmul.f32 %v607, %v666
      %v687 = vmul.f32 %v610, %v666
      %v688 = vmul.f32 %v615, %v666
      %v689 = vmul.f32 %v618, %v666
      %v690 = vmul.f32 %v623, %v666
      %v691 = vmul.f32 %v626, %v666
      %v692 = vmul.f32 %v631, %v666
      %v693 = vmul.f32 %v634, %v666
      %v694 = vmul.f32 %v639, %v666
      %v695 = vmul.f32 %v642, %v666
      %v696 = vmul.f32 %v647, %v666
      %v697 = vmul.f32 %v650, %v666
      %v698 = vmul.f32 %v655, %v666
      %v699 = vmul.f32 %v658, %v666
      %v700 = vld [vmem:[%s297] sm:$0x1]
      %v702 = vlaneseq
      %v703 = vshrl.u32 %v702, 7
      %v704 = vsub.s32 0, %v703
      %v705 = vrot.slane %v700, %v704
      %v707 = vadd.f32 %v668, %v705
      %v708 = vadd.f32 %v669, %v705
      %v709 = vadd.f32 %v670, %v705
      %v710 = vadd.f32 %v671, %v705
      %v711 = vadd.f32 %v672, %v705
      %v712 = vadd.f32 %v673, %v705
      %v713 = vadd.f32 %v674, %v705
      %v714 = vadd.f32 %v675, %v705
      %v715 = vadd.f32 %v676, %v705
      %v716 = vadd.f32 %v677, %v705
      %v717 = vadd.f32 %v678, %v705
      %v718 = vadd.f32 %v679, %v705
      %v719 = vadd.f32 %v680, %v705
      %v720 = vadd.f32 %v681, %v705
      %v721 = vadd.f32 %v682, %v705
      %v722 = vadd.f32 %v683, %v705
      %v723 = vadd.f32 %v684, %v705
      %v724 = vadd.f32 %v685, %v705
      %v725 = vadd.f32 %v686, %v705
      %v726 = vadd.f32 %v687, %v705
      %v727 = vadd.f32 %v688, %v705
      %v728 = vadd.f32 %v689, %v705
      %v729 = vadd.f32 %v690, %v705
      %v730 = vadd.f32 %v691, %v705
      %v731 = vadd.f32 %v692, %v705
      %v732 = vadd.f32 %v693, %v705
      %v733 = vadd.f32 %v694, %v705
      %v734 = vadd.f32 %v695, %v705
      %v735 = vadd.f32 %v696, %v705
      %v736 = vadd.f32 %v697, %v705
      %v737 = vadd.f32 %v698, %v705
      %v738 = vadd.f32 %v699, %v705
      %v739 = vmax.f32 %v707, 0.0
      %v740 = vmax.f32 %v708, 0.0
      %v741 = vmax.f32 %v709, 0.0
      %v742 = vmax.f32 %v710, 0.0
      %v743 = vmax.f32 %v711, 0.0
      %v744 = vmax.f32 %v712, 0.0
      %v745 = vmax.f32 %v713, 0.0
      %v746 = vmax.f32 %v714, 0.0
      %v747 = vmax.f32 %v715, 0.0
      %v748 = vmax.f32 %v716, 0.0
      %v749 = vmax.f32 %v717, 0.0
      %v750 = vmax.f32 %v718, 0.0
      %v751 = vmax.f32 %v719, 0.0
      %v752 = vmax.f32 %v720, 0.0
      %v753 = vmax.f32 %v721, 0.0
      %v754 = vmax.f32 %v722, 0.0
      %v755 = vmax.f32 %v723, 0.0
      %v756 = vmax.f32 %v724, 0.0
      %v757 = vmax.f32 %v725, 0.0
      %v758 = vmax.f32 %v726, 0.0
      %v759 = vmax.f32 %v727, 0.0
      %v760 = vmax.f32 %v728, 0.0
      %v761 = vmax.f32 %v729, 0.0
      %v762 = vmax.f32 %v730, 0.0
      %v763 = vmax.f32 %v731, 0.0
      %v764 = vmax.f32 %v732, 0.0
      %v765 = vmax.f32 %v733, 0.0
      %v766 = vmax.f32 %v734, 0.0
      %v767 = vmax.f32 %v735, 0.0
      %v768 = vmax.f32 %v736, 0.0
      %v769 = vmax.f32 %v737, 0.0
      %v770 = vmax.f32 %v738, 0.0
      %v771 = vpack.c.bf16 %v740, %v739
      %v772 = vpack.c.bf16 %v742, %v741
      %v773 = vpack.c.bf16 %v744, %v743
      %v774 = vpack.c.bf16 %v746, %v745
      %v775 = vpack.c.bf16 %v748, %v747
      %v776 = vpack.c.bf16 %v750, %v749
      %v777 = vpack.c.bf16 %v752, %v751
      %v778 = vpack.c.bf16 %v754, %v753
      %v779 = vpack.c.bf16 %v756, %v755
      %v780 = vpack.c.bf16 %v758, %v757
      %v781 = vpack.c.bf16 %v760, %v759
      %v782 = vpack.c.bf16 %v762, %v761
      %v783 = vpack.c.bf16 %v764, %v763
      %v784 = vpack.c.bf16 %v766, %v765
      %v785 = vpack.c.bf16 %v768, %v767
      %v786 = vpack.c.bf16 %v770, %v769
      %v803 = vunpack.c.l.b16 %v771
      %v804 = vunpack.c.h.b16 %v771
      %v805 = vunpack.c.l.b16 %v772
      %v806 = vunpack.c.h.b16 %v772
      %v807 = vunpack.c.l.b16 %v773
      %v808 = vunpack.c.h.b16 %v773
      %v809 = vunpack.c.l.b16 %v774
      %v810 = vunpack.c.h.b16 %v774
      %v811 = vunpack.c.l.b16 %v775
      %v812 = vunpack.c.h.b16 %v775
      %v813 = vunpack.c.l.b16 %v776
      %v814 = vunpack.c.h.b16 %v776
      %v815 = vunpack.c.l.b16 %v777
      %v816 = vunpack.c.h.b16 %v777
      %v817 = vunpack.c.l.b16 %v778
      %v818 = vunpack.c.h.b16 %v778
      %v819 = vunpack.c.l.b16 %v779
      %v820 = vunpack.c.h.b16 %v779
      %v821 = vunpack.c.l.b16 %v780
      %v822 = vunpack.c.h.b16 %v780
      %v823 = vunpack.c.l.b16 %v781
      %v824 = vunpack.c.h.b16 %v781
      %v825 = vunpack.c.l.b16 %v782
      %v826 = vunpack.c.h.b16 %v782
      %v827 = vunpack.c.l.b16 %v783
      %v828 = vunpack.c.h.b16 %v783
      %v829 = vunpack.c.l.b16 %v784
      %v830 = vunpack.c.h.b16 %v784
      %v831 = vunpack.c.l.b16 %v785
      %v832 = vunpack.c.h.b16 %v785
      %v833 = vunpack.c.l.b16 %v786
      %v834 = vunpack.c.h.b16 %v786
      %v835 = vpack.c.b16 %v803, %v803
      %v836 = vpack.c.b16 %v804, %v804
      %v837 = vpack.c.b16 %v805, %v805
      %v838 = vpack.c.b16 %v806, %v806
      %v839 = vpack.c.b16 %v807, %v807
      %v840 = vpack.c.b16 %v808, %v808
      %v841 = vpack.c.b16 %v809, %v809
      %v842 = vpack.c.b16 %v810, %v810
      %v843 = vpack.c.b16 %v811, %v811
      %v844 = vpack.c.b16 %v812, %v812
      %v845 = vpack.c.b16 %v813, %v813
      %v846 = vpack.c.b16 %v814, %v814
      %v847 = vpack.c.b16 %v815, %v815
      %v848 = vpack.c.b16 %v816, %v816
      %v849 = vpack.c.b16 %v817, %v817
      %v850 = vpack.c.b16 %v818, %v818
      %v851 = vpack.c.b16 %v819, %v819
      %v852 = vpack.c.b16 %v820, %v820
      %v853 = vpack.c.b16 %v821, %v821
      %v854 = vpack.c.b16 %v822, %v822
      %v855 = vpack.c.b16 %v823, %v823
      %v856 = vpack.c.b16 %v824, %v824
      %v857 = vpack.c.b16 %v825, %v825
      %v858 = vpack.c.b16 %v826, %v826
      %v859 = vpack.c.b16 %v827, %v827
      %v860 = vpack.c.b16 %v828, %v828
      %v861 = vpack.c.b16 %v829, %v829
      %v862 = vpack.c.b16 %v830, %v830
      %v863 = vpack.c.b16 %v831, %v831
      %v864 = vpack.c.b16 %v832, %v832
      %v865 = vpack.c.b16 %v833, %v833
      %v866 = vpack.c.b16 %v834, %v834
      %899 = vst [vmem:[%s305] sm:$0xf] %v835
      %900 = vst [vmem:[%s305 + $0x4] sm:$0xf] %v836
      %901 = vst [vmem:[%s305 + $0x8] sm:$0xf] %v837
      %902 = vst [vmem:[%s305 + $0xc] sm:$0xf] %v838
      %903 = vst [vmem:[%s305 + $0x10] sm:$0xf] %v839
      %904 = vst [vmem:[%s305 + $0x14] sm:$0xf] %v840
      %905 = vst [vmem:[%s305 + $0x18] sm:$0xf] %v841
      %906 = vst [vmem:[%s305 + $0x1c] sm:$0xf] %v842
      %907 = vst [vmem:[%s305 + $0x20] sm:$0xf] %v843
      %908 = vst [vmem:[%s305 + $0x24] sm:$0xf] %v844
      %909 = vst [vmem:[%s305 + $0x28] sm:$0xf] %v845
      %910 = vst [vmem:[%s305 + $0x2c] sm:$0xf] %v846
      %911 = vst [vmem:[%s305 + $0x30] sm:$0xf] %v847
      %912 = vst [vmem:[%s305 + $0x34] sm:$0xf] %v848
      %913 = vst [vmem:[%s305 + $0x38] sm:$0xf] %v849
      %914 = vst [vmem:[%s305 + $0x3c] sm:$0xf] %v850
      %915 = vst [vmem:[%s305 + $0x40] sm:$0xf] %v851
      %916 = vst [vmem:[%s305 + $0x44] sm:$0xf] %v852
      %917 = vst [vmem:[%s305 + $0x48] sm:$0xf] %v853
      %918 = vst [vmem:[%s305 + $0x4c] sm:$0xf] %v854
      %919 = vst [vmem:[%s305 + $0x50] sm:$0xf] %v855
      %920 = vst [vmem:[%s305 + $0x54] sm:$0xf] %v856
      %921 = vst [vmem:[%s305 + $0x58] sm:$0xf] %v857
      %922 = vst [vmem:[%s305 + $0x5c] sm:$0xf] %v858
      %923 = vst [vmem:[%s305 + $0x60] sm:$0xf] %v859
      %924 = vst [vmem:[%s305 + $0x64] sm:$0xf] %v860
      %925 = vst [vmem:[%s305 + $0x68] sm:$0xf] %v861
      %926 = vst [vmem:[%s305 + $0x6c] sm:$0xf] %v862
      %927 = vst [vmem:[%s305 + $0x70] sm:$0xf] %v863
      %928 = vst [vmem:[%s305 + $0x74] sm:$0xf] %v864
      %929 = vst [vmem:[%s305 + $0x78] sm:$0xf] %v865
      %930 = vst [vmem:[%s305 + $0x7c] sm:$0xf] %v866
      %s931 = smul.u32 32, %s20
      %p932 = scmp.lt.s32.totalorder %s931, 63
      %s933 = scalar_select %p932, %s931, 63
      %p934 = scmp.lt.s32.totalorder %s21, 0
      %s935 = scalar_select %p934, %s21, 0
      %s936 = sadd.s32 %s935, %s933
      %s937 = smul.addr %s936, 4
      %s938 = scalar_lea.vmem %s5, %s937
      // Predicated region
      $region41: #{wide_block_forward.5} parent=39 // pred_check
        %p939 = pneg %p178
      $region42: #{wide_block_forward.5} parent=39 // pred_check_branch
        %941 = sbr.rel (%p939) target = $region44
      $region43: #{wide_block_forward.5} parent=39 // pred_region
        %s942 = smul.u32 32, %s20
      $region44: #{wide_block_forward.5} parent=39 // pred_fallthru
        _
    $region40: #{wide_block_forward.5} parent=5 // pred_fallthru
      _
    %p943 = scmp.le.s32.totalorder 2, %s11
    // Predicated region
    $region45: #{wide_block_forward.5} parent=5 // pred_check
      %p944 = pneg %p943
    $region46: #{wide_block_forward.5} parent=5 // pred_check_branch
      %946 = sbr.rel (%p944) target = $region48
    $region47: #{wide_block_forward.5} parent=5 // pred_region
      %s947 = ssub.s32 %s11, 2
      // Predicated region
      $region49: #{wide_block_forward.5} parent=47 // pred_check
        %p948 = pneg %p184
      $region50: #{wide_block_forward.5} parent=47 // pred_check_branch
        %950 = sbr.rel (%p948) target = $region52
      $region51: #{wide_block_forward.5} parent=47 // pred_region
        %s951 = smul.u32 32, %s22
        %p952 = scmp.lt.s32.totalorder %s951, 63
        %s953 = scalar_select %p952, %s951, 63
        %p954 = scmp.lt.s32.totalorder %s23, 0
        %s955 = scalar_select %p954, %s23, 0
        %s956 = sadd.s32 %s955, %s953
        %s957 = smul.addr %s956, 4
        %s958 = scalar_lea.vmem %s5, %s957
      $region52: #{wide_block_forward.5} parent=47 // pred_fallthru
        _
    $region48: #{wide_block_forward.5} parent=5 // pred_fallthru
      _
  $region6: #{wide_block_forward.5} parent=0 // loop_footer
    %s15 = sadd.s32 1, %s11
  $region7: #{wide_block_forward.5} parent=0 // loop_footer_branch
    %10 = sbr.rel target = $region3
  $region8: #{wide_block_forward.5} parent=0 // loop_exit
    _

// kernel: wide_block_forward.7
$region0: #{wide_block_forward.7}
  #allocation0 [shape = 'u32[]', space=smem, size = 0x4, offset = 0x4, fixed_abs, tag = 'smem constant byte address 0x4 - core index']
  #allocation1 [shape = 'u32[144,128]{1,0:T(1,128)}', space=vmem, size = 0x12000, scoped, tag = 'internal scratch']
  %s0 = inlined_call_operand.vmem [shape: bf16[512,72], index: 0, kind: input, shape index: {}]
  %s1 = inlined_call_operand.vmem [shape: bf16[72,128], index: 1, kind: input, shape index: {}]
  %s2 = inlined_call_operand.vmem [shape: f32[1,128], index: 2, kind: input, shape index: {}]
  %s3 = inlined_call_operand.vmem [shape: bf16[512,128], index: 3, kind: input, shape index: {}]
  %s4 = inlined_call_operand.vmem [shape: f32[512,128], index: 4, kind: output, shape index: {}]
  %s5 = sld [smem:[#allocation0]]
  $region49: #{wide_block_forward.7} parent=0
    _
  %s7 = ssub.s32 1, %s5
  %s8 = scalar_select 0, %s7, %s5
  loop: start=0, step=1, limit=4
  $region2: #{wide_block_forward.7} parent=0 // loop_pre_header
    _
  $region3: #{wide_block_forward.7} parent=0 // loop_header
    %s10 = sphi 0, %s14
    %p11 = scmp.ge.s32.totalorder %s10, 4
    %s17 = sphi 0, %s29
    %s18 = sphi 0, %s25
    %s19 = sphi 0, %s17
    %s20 = sphi 0, %s18
    %s21 = sphi 0, %s19
    %s22 = sphi 0, %s20
    %s32 = sphi 0, %s34
    %s35 = sphi 0, %s32
    %s36 = sphi 0, %s35
    %s52 = sphi 0, %s36
    %s58 = sphi 0, %s60
    %s61 = sphi 0, %s58
    %s62 = sphi 0, %s61
    %s78 = sphi 0, %s62
    %s84 = sphi 0, %s86
    %s87 = sphi 0, %s84
    %s88 = sphi 0, %s87
    %s104 = sphi 0, %s88
    %s112 = sphi 0, %s114
    %s115 = sphi 0, %s112
    %s116 = sphi 0, %s115
    %s132 = sphi 0, %s116
    %s140 = sphi 0, %s142
    %s143 = sphi 0, %s140
    %s144 = sphi 0, %s143
    %s160 = sphi 0, %s144
  $region4: #{wide_block_forward.7} parent=0 // loop_header_branch
    %13 = sbr.rel (%p11) target = $region8
  $region5: #{wide_block_forward.7} parent=0 // loop_body
    %s15 = ssub.s32 %s10, 1
    %s16 = ssub.s32 %s10, 2
    %s23 = sadd.s32 1, %s18
    %p24 = scmp.ge.s32.totalorder %s23, 1
    %s25 = scalar_select %p24, 0, %s23
    %s26 = sadd.s32 1, %s17
    %s27 = scalar_select %p24, %s26, %s17
    %p28 = scmp.ge.s32.totalorder %s27, 2
    %s29 = scalar_select %p28, 0, %s27
    %s30 = ssub.s32 %s17, %s29
    %p31 = scmp.eq.s32.totalorder %s30, 0
    %s33 = sadd.s32 %s32, 1
    %s34 = scalar_select %p31, %s32, %s33
    %p37 = pneg %p31
    %p38 = scmp.eq.s32.totalorder %s10, 1
    %p39 = por %p37, %p38
    %p40 = scmp.ne.s32.totalorder %s32, %s35
    %p41 = scmp.eq.s32.totalorder %s10, 0
    %p42 = por %p40, %p41
    %p43 = scmp.ne.s32.totalorder %s32, %s35
    %p44 = scmp.eq.s32.totalorder %s15, 1
    %p45 = por %p43, %p44
    %p46 = scmp.ne.s32.totalorder %s35, %s36
    %p47 = scmp.eq.s32.totalorder %s15, 0
    %p48 = por %p46, %p47
    %p49 = scmp.ne.s32.totalorder %s35, %s36
    %p50 = scmp.eq.s32.totalorder %s16, 1
    %p51 = por %p49, %p50
    %p53 = scmp.ne.s32.totalorder %s36, %s52
    %p54 = scmp.eq.s32.totalorder %s16, 0
    %p55 = por %p53, %p54
    %s56 = ssub.s32 %s18, %s25
    %p57 = scmp.eq.s32.totalorder %s56, 0
    %s59 = sadd.s32 %s58, 1
    %s60 = scalar_select %p57, %s58, %s59
    %p63 = pneg %p57
    %p64 = scmp.eq.s32.totalorder %s10, 1
    %p65 = por %p63, %p64
    %p66 = scmp.ne.s32.totalorder %s58, %s61
    %p67 = scmp.eq.s32.totalorder %s10, 0
    %p68 = por %p66, %p67
    %p69 = scmp.ne.s32.totalorder %s58, %s61
    %p70 = scmp.eq.s32.totalorder %s15, 1
    %p71 = por %p69, %p70
    %p72 = scmp.ne.s32.totalorder %s61, %s62
    %p73 = scmp.eq.s32.totalorder %s15, 0
    %p74 = por %p72, %p73
    %p75 = scmp.ne.s32.totalorder %s61, %s62
    %p76 = scmp.eq.s32.totalorder %s16, 1
    %p77 = por %p75, %p76
    %p79 = scmp.ne.s32.totalorder %s62, %s78
    %p80 = scmp.eq.s32.totalorder %s16, 0
    %p81 = por %p79, %p80
    %s82 = ssub.s32 %s18, %s25
    %p83 = scmp.eq.s32.totalorder %s82, 0
    %s85 = sadd.s32 %s84, 1
    %s86 = scalar_select %p83, %s84, %s85
    %p89 = pneg %p83
    %p90 = scmp.eq.s32.totalorder %s10, 1
    %p91 = por %p89, %p90
    %p92 = scmp.ne.s32.totalorder %s84, %s87
    %p93 = scmp.eq.s32.totalorder %s10, 0
    %p94 = por %p92, %p93
    %p95 = scmp.ne.s32.totalorder %s84, %s87
    %p96 = scmp.eq.s32.totalorder %s15, 1
    %p97 = por %p95, %p96
    %p98 = scmp.ne.s32.totalorder %s87, %s88
    %p99 = scmp.eq.s32.totalorder %s15, 0
    %p100 = por %p98, %p99
    %p101 = scmp.ne.s32.totalorder %s87, %s88
    %p102 = scmp.eq.s32.totalorder %s16, 1
    %p103 = por %p101, %p102
    %p105 = scmp.ne.s32.totalorder %s88, %s104
    %p106 = scmp.eq.s32.totalorder %s16, 0
    %p107 = por %p105, %p106
    %s108 = ssub.s32 %s17, %s29
    %s109 = ssub.s32 %s18, %s25
    %s110 = sor.u32 %s108, %s109
    %p111 = scmp.eq.s32.totalorder %s110, 0
    %s113 = sadd.s32 %s112, 1
    %s114 = scalar_select %p111, %s112, %s113
    %p117 = pneg %p111
    %p118 = scmp.eq.s32.totalorder %s10, 1
    %p119 = por %p117, %p118
    %p120 = scmp.ne.s32.totalorder %s112, %s115
    %p121 = scmp.eq.s32.totalorder %s10, 0
    %p122 = por %p120, %p121
    %p123 = scmp.ne.s32.totalorder %s112, %s115
    %p124 = scmp.eq.s32.totalorder %s15, 1
    %p125 = por %p123, %p124
    %p126 = scmp.ne.s32.totalorder %s115, %s116
    %p127 = scmp.eq.s32.totalorder %s15, 0
    %p128 = por %p126, %p127
    %p129 = scmp.ne.s32.totalorder %s115, %s116
    %p130 = scmp.eq.s32.totalorder %s16, 1
    %p131 = por %p129, %p130
    %p133 = scmp.ne.s32.totalorder %s116, %s132
    %p134 = scmp.eq.s32.totalorder %s16, 0
    %p135 = por %p133, %p134
    %s136 = ssub.s32 %s17, %s29
    %s137 = ssub.s32 %s18, %s25
    %s138 = sor.u32 %s136, %s137
    %p139 = scmp.eq.s32.totalorder %s138, 0
    %s141 = sadd.s32 %s140, 1
    %s142 = scalar_select %p139, %s140, %s141
    %p145 = pneg %p139
    %p146 = scmp.eq.s32.totalorder %s10, 1
    %p147 = por %p145, %p146
    %p148 = scmp.ne.s32.totalorder %s140, %s143
    %p149 = scmp.eq.s32.totalorder %s10, 0
    %p150 = por %p148, %p149
    %p151 = scmp.ne.s32.totalorder %s140, %s143
    %p152 = scmp.eq.s32.totalorder %s15, 1
    %p153 = por %p151, %p152
    %p154 = scmp.ne.s32.totalorder %s143, %s144
    %p155 = scmp.eq.s32.totalorder %s15, 0
    %p156 = por %p154, %p155
    %p157 = scmp.ne.s32.totalorder %s143, %s144
    %p158 = scmp.eq.s32.totalorder %s16, 1
    %p159 = por %p157, %p158
    %p161 = scmp.ne.s32.totalorder %s144, %s160
    %p162 = scmp.eq.s32.totalorder %s16, 0
    %p163 = por %p161, %p162
    %p164 = scmp.le.s32.totalorder 1, %s10
    %p165 = scmp.lt.s32.totalorder %s10, 3
    %p166 = pnand %p164, %p165
    %p167 = pneg %p166
    // Predicated region
    $region9: #{wide_block_forward.7} parent=5 // pred_check
      _
    $region10: #{wide_block_forward.7} parent=5 // pred_check_branch
      %169 = sbr.rel (%p166) target = $region12
    $region11: #{wide_block_forward.7} parent=5 // pred_region
      %s170 = ssub.s32 %s10, 1
      // Predicated region
      $region13: #{wide_block_forward.7} parent=11 // pred_check
        %p171 = pneg %p74
      $region14: #{wide_block_forward.7} parent=11 // pred_check_branch
        %173 = sbr.rel (%p171) target = $region16
      $region15: #{wide_block_forward.7} parent=11 // pred_region
        %p174 = scmp.lt.s32.totalorder %s20, 0
        %s175 = scalar_select %p174, %s20, 0
        %s176 = smul.addr %s175, 4
        %s177 = scalar_lea.vmem %s1, %s176
      $region16: #{wide_block_forward.7} parent=11 // pred_fallthru
        _
      // Predicated region
      $region17: #{wide_block_forward.7} parent=11 // pred_check
        %p178 = pneg %p100
      $region18: #{wide_block_forward.7} parent=11 // pred_check_branch
        %180 = sbr.rel (%p178) target = $region20
      $region19: #{wide_block_forward.7} parent=11 // pred_region
        %p181 = scmp.lt.s32.totalorder %s20, 0
        %s182 = scalar_select %p181, %s20, 0
        %s183 = scalar_lea.vmem %s2, %s182
      $region20: #{wide_block_forward.7} parent=11 // pred_fallthru
        _
    $region12: #{wide_block_forward.7} parent=5 // pred_fallthru
      _
    %p184 = scmp.lt.s32.totalorder %s10, 2
    // Predicated region
    $region21: #{wide_block_forward.7} parent=5 // pred_check
      %p185 = pneg %p184
    $region22: #{wide_block_forward.7} parent=5 // pred_check_branch
      %187 = sbr.rel (%p185) target = $region24
    $region23: #{wide_block_forward.7} parent=5 // pred_region
      // Predicated region
      $region25: #{wide_block_forward.7} parent=23 // pred_check
        %p188 = pneg %p42
      $region26: #{wide_block_forward.7} parent=23 // pred_check_branch
        %190 = sbr.rel (%p188) target = $region28
      $region27: #{wide_block_forward.7} parent=23 // pred_region
        %s191 = smul.u32 32, %s17
        %p192 = scmp.lt.s32.totalorder %s191, 63
        %s193 = scalar_select %p192, %s191, 63
        %s194 = smul.addr %s193, 4
        %s195 = scalar_lea.vmem %s0, %s194
        %s196 = smul.u32 32, %s17
      $region28: #{wide_block_forward.7} parent=23 // pred_fallthru
        _
      // Predicated region
      $region29: #{wide_block_forward.7} parent=23 // pred_check
        %p197 = pneg %p122
      $region30: #{wide_block_forward.7} parent=23 // pred_check_branch
        %199 = sbr.rel (%p197) target = $region32
      $region31: #{wide_block_forward.7} parent=23 // pred_region
        %s200 = smul.u32 32, %s17
        %p201 = scmp.lt.s32.totalorder %s200, 63
        %s202 = scalar_select %p201, %s200, 63
        %p203 = scmp.lt.s32.totalorder %s18, 0
        %s204 = scalar_select %p203, %s18, 0
        %s205 = sadd.s32 %s204, %s202
        %s206 = smul.addr %s205, 4
        %s207 = scalar_lea.vmem %s3, %s206
        %s208 = smul.u32 32, %s17
      $region32: #{wide_block_forward.7} parent=23 // pred_fallthru
        _
    $region24: #{wide_block_forward.7} parent=5 // pred_fallthru
      _
    %p209 = scmp.le.s32.totalorder 1, %s10
    %p210 = scmp.lt.s32.totalorder %s10, 3
    %p211 = pnand %p209, %p210
    %p212 = pneg %p211
    // Predicated region
    $region33: #{wide_block_forward.7} parent=5 // pred_check
      _
    $region34: #{wide_block_forward.7} parent=5 // pred_check_branch
      %214 = sbr.rel (%p211) target = $region36
    $region35: #{wide_block_forward.7} parent=5 // pred_region
      %s215 = ssub.s32 %s10, 1
      %s216 = smul.u32 32, %s19
      %p217 = scmp.lt.s32.totalorder %s216, 63
      %s218 = scalar_select %p217, %s216, 63
      %s219 = smul.addr %s218, 4
      %s220 = scalar_lea.vmem %s0, %s219
      %p221 = pneg %p48
      %p222 = pneg %p45
      %p223 = scmp.lt.s32.totalorder %s20, 0
      %s224 = scalar_select %p223, %s20, 0
      %s225 = smul.addr %s224, 4
      %s226 = scalar_lea.vmem %s1, %s225
      %p227 = pneg %p74
      %p228 = pneg %p71
      %p229 = scmp.lt.s32.totalorder %s20, 0
      %s230 = scalar_select %p229, %s20, 0
      %s231 = scalar_lea.vmem %s2, %s230
      %p232 = pneg %p100
      %p233 = pneg %p97
      %s234 = smul.u32 32, %s19
      %p235 = scmp.lt.s32.totalorder %s234, 63
      %s236 = scalar_select %p235, %s234, 63
      %p237 = scmp.lt.s32.totalorder %s20, 0
      %s238 = scalar_select %p237, %s20, 0
      %s239 = sadd.s32 %s238, %s236
      %s240 = smul.addr %s239, 4
      %s241 = scalar_lea.vmem %s3, %s240
      %p242 = pneg %p128
      %p243 = pneg %p125
      %p244 = pneg %p156
      %p245 = pneg %p153
      %s246 = smul.u32 32, %s19
      %p247 = scmp.lt.s32.totalorder %s246, 63
      %s248 = scalar_select %p247, %s246, 63
      %p249 = scmp.lt.s32.totalorder %s20, 0
      %s250 = scalar_select %p249, %s20, 0
      %s251 = sadd.s32 %s250, %s248
      %s252 = smul.addr %s251, 8
      %s253 = scalar_lea.vmem %s4, %s252
      %s254 = smul.u32 32, %s19
      %p255 = scmp.lt.s32.totalorder %s254, 63
      %s256 = scalar_select %p255, %s254, 63
      %s257 = smul.addr %s256, 4
      %s258 = scalar_lea.vmem %s0, %s257
      %s259 = smul.u32 32, %s19
      %p260 = scmp.lt.s32.totalorder %s20, 0
      %s261 = scalar_select %p260, %s20, 0
      %s262 = smul.addr %s261, 4
      %s263 = scalar_lea.vmem %s1, %s262
      %p264 = scmp.lt.s32.totalorder %s20, 0
      %s265 = scalar_select %p264, %s20, 0
      %s266 = scalar_lea.vmem %s2, %s265
      %s267 = smul.u32 32, %s19
      %p268 = scmp.lt.s32.totalorder %s267, 63
      %s269 = scalar_select %p268, %s267, 63
      %p270 = scmp.lt.s32.totalorder %s20, 0
      %s271 = scalar_select %p270, %s20, 0
      %s272 = sadd.s32 %s271, %s269
      %s273 = smul.addr %s272, 4
      %s274 = scalar_lea.vmem %s3, %s273
      %s275 = smul.u32 32, %s19
      %s276 = smul.u32 32, %s19
      %p277 = scmp.lt.s32.totalorder %s276, 63
      %s278 = scalar_select %p277, %s276, 63
      %p279 = scmp.lt.s32.totalorder %s20, 0
      %s280 = scalar_select %p279, %s20, 0
      %s281 = sadd.s32 %s280, %s278
      %s282 = smul.addr %s281, 8
      %s283 = scalar_lea.vmem %s4, %s282
      %s284 = smul.u32 32, %s19
      %v286 = vld [vmem:[%s258] sm:$0xf]
      %v287 = vld [vmem:[%s258 + $0x4] sm:$0xf]
      %v288 = vld [vmem:[%s258 + $0x8] sm:$0xf]
      %v289 = vld [vmem:[%s258 + $0xc] sm:$0xf]
      %v290 = vld [vmem:[%s258 + $0x10] sm:$0xf]
      %v291 = vld [vmem:[%s258 + $0x14] sm:$0xf]
      %v292 = vld [vmem:[%s258 + $0x18] sm:$0xf]
      %v293 = vld [vmem:[%s258 + $0x1c] sm:$0xf]
      %v294 = vld [vmem:[%s258 + $0x20] sm:$0xf]
      %v295 = vld [vmem:[%s258 + $0x24] sm:$0xf]
      %v296 = vld [vmem:[%s258 + $0x28] sm:$0xf]
      %v297 = vld [vmem:[%s258 + $0x2c] sm:$0xf]
      %v298 = vld [vmem:[%s258 + $0x30] sm:$0xf]
      %v299 = vld [vmem:[%s258 + $0x34] sm:$0xf]
      %v300 = vld [vmem:[%s258 + $0x38] sm:$0xf]
      %v301 = vld [vmem:[%s258 + $0x3c] sm:$0xf]
      %v302 = vld [vmem:[%s258 + $0x40] sm:$0xf]
      %v303 = vld [vmem:[%s258 + $0x44] sm:$0xf]
      %v304 = vld [vmem:[%s258 + $0x48] sm:$0xf]
      %v305 = vld [vmem:[%s258 + $0x4c] sm:$0xf]
      %v306 = vld [vmem:[%s258 + $0x50] sm:$0xf]
      %v307 = vld [vmem:[%s258 + $0x54] sm:$0xf]
      %v308 = vld [vmem:[%s258 + $0x58] sm:$0xf]
      %v309 = vld [vmem:[%s258 + $0x5c] sm:$0xf]
      %v310 = vld [vmem:[%s258 + $0x60] sm:$0xf]
      %v311 = vld [vmem:[%s258 + $0x64] sm:$0xf]
      %v312 = vld [vmem:[%s258 + $0x68] sm:$0xf]
      %v313 = vld [vmem:[%s258 + $0x6c] sm:$0xf]
      %v314 = vld [vmem:[%s258 + $0x70] sm:$0xf]
      %v315 = vld [vmem:[%s258 + $0x74] sm:$0xf]
      %v316 = vld [vmem:[%s258 + $0x78] sm:$0xf]
      %v317 = vld [vmem:[%s258 + $0x7c] sm:$0xf]
      %v318 = vld [vmem:[%s263] sm:$0xf]
      %v319 = vld [vmem:[%s263 + $0x4] sm:$0xf]
      %v320 = vld [vmem:[%s263 + $0x8] sm:$0xf]
      %v321 = vld [vmem:[%s263 + $0xc] sm:$0xf]
      %v322 = vld [vmem:[%s263 + $0x10] sm:$0xf]
      %v323 = vld [vmem:[%s263 + $0x14] sm:$0xf]
      %v324 = vld [vmem:[%s263 + $0x18] sm:$0xf]
      %v325 = vld [vmem:[%s263 + $0x1c] sm:$0xf]
      %v326 = vld [vmem:[%s263 + $0x20] sm:$0xf]
      %v327 = vld [vmem:[%s266] sm:$0x1]
      %v329 = vlaneseq
      %v330 = vshrl.u32 %v329, 7
      %v331 = vsub.s32 0, %v330
      %v332 = vrot.slane %v327, %v331
      %v366 = vunpack.c.l.b16 %v286
      %v367 = vunpack.c.l.b16 %v287
      %v368 = vunpack.c.l.b16 %v288
      %v369 = vunpack.c.l.b16 %v289
      %v370 = vunpack.c.l.b16 %v290
      %v371 = vunpack.c.l.b16 %v291
      %v372 = vunpack.c.l.b16 %v292
      %v373 = vunpack.c.l.b16 %v293
      %v374 = vunpack.c.l.b16 %v294
      %v375 = vunpack.c.l.b16 %v295
      %v376 = vunpack.c.l.b16 %v296
      %v377 = vunpack.c.l.b16 %v297
      %v378 = vunpack.c.l.b16 %v298
      %v379 = vunpack.c.l.b16 %v299
      %v380 = vunpack.c.l.b16 %v300
      %v381 = vunpack.c.l.b16 %v301
      %v382 = vunpack.c.l.b16 %v302
      %v383 = vunpack.c.l.b16 %v303
      %v384 = vunpack.c.l.b16 %v304
      %v385 = vunpack.c.l.b16 %v305
      %v386 = vunpack.c.l.b16 %v306
      %v387 = vunpack.c.l.b16 %v307
      %v388 = vunpack.c.l.b16 %v308
      %v389 = vunpack.c.l.b16 %v309
      %v390 = vunpack.c.l.b16 %v310
      %v391 = vunpack.c.l.b16 %v311
      %v392 = vunpack.c.l.b16 %v312
      %v393 = vunpack.c.l.b16 %v313
      %v394 = vunpack.c.l.b16 %v314
      %v395 = vunpack.c.l.b16 %v315
      %v396 = vunpack.c.l.b16 %v316
      %v397 = vunpack.c.l.b16 %v317
      %v398 = vpack.c.b16 %v367, %v366
      %v399 = vpack.c.b16 %v369, %v368
      %v400 = vpack.c.b16 %v371, %v370
      %v401 = vpack.c.b16 %v373, %v372
      %v402 = vpack.c.b16 %v375, %v374
      %v403 = vpack.c.b16 %v377, %v376
      %v404 = vpack.c.b16 %v379, %v378
      %v405 = vpack.c.b16 %v381, %v380
      %v406 = vpack.c.b16 %v383, %v382
      %v407 = vpack.c.b16 %v385, %v384
      %v408 = vpack.c.b16 %v387, %v386
      %v409 = vpack.c.b16 %v389, %v388
      %v410 = vpack.c.b16 %v391, %v390
      %v411 = vpack.c.b16 %v393, %v392
      %v412 = vpack.c.b16 %v395, %v394
      %v413 = vpack.c.b16 %v397, %v396
      %v423 = vunpack.c.l.b16 %v318
      %v424 = vunpack.c.l.b16 %v319
      %v425 = vunpack.c.l.b16 %v320
      %v426 = vunpack.c.l.b16 %v321
      %v427 = vunpack.c.l.b16 %v322
      %v428 = vunpack.c.l.b16 %v323
      %v429 = vunpack.c.l.b16 %v324
      %v430 = vunpack.c.l.b16 %v325
      %v431 = vunpack.c.l.b16 %v326
      %v432 = vpack.c.b16 %v424, %v423
      %v433 = vpack.c.b16 %v426, %v425
      %v434 = vpack.c.b16 %v428, %v427
      %v435 = vpack.c.b16 %v430, %v429
      %v436 = vpack.c.b16 %v431, %v431
      %vm441 = vcmask 588800
      %v443 = vsel %vm441, %v398, 0
      %v446 = vsel %vm441, %v399, 0
      %v449 = vsel %vm441, %v400, 0
      %v452 = vsel %vm441, %v401, 0
      %v455 = vsel %vm441, %v402, 0
      %v458 = vsel %vm441, %v403, 0
      %v461 = vsel %vm441, %v404, 0
      %v464 = vsel %vm441, %v405, 0
      %v467 = vsel %vm441, %v406, 0
      %v470 = vsel %vm441, %v407, 0
      %v473 = vsel %vm441, %v408, 0
      %v476 = vsel %vm441, %v409, 0
      %v479 = vsel %vm441, %v410, 0
      %v482 = vsel %vm441, %v411, 0
      %v485 = vsel %vm441, %v412, 0
      %v488 = vsel %vm441, %v413, 0
      %vm490 = vcmask 1043456
      %v492 = vsel %vm490, %v436, 0
      %494 = vmatprep.subr.bf16.mxu0 0
      %495 = vmatpush1.bf16.msra.mxu0 %v432
      %496 = vmatprep.subr.bf16.mxu0 0
      %497 = vmatpush1.bf16.msra.mxu0 %v433
      %498 = vmatprep.subr.bf16.mxu0 0
      %499 = vmatpush1.bf16.msra.mxu0 %v434
      %500 = vmatprep.subr.bf16.mxu0 0
      %501 = vmatpush1.bf16.msra.mxu0 %v435
      %502 = vmatprep.subr.bf16.mxu0 0
      %503 = vmatpush1.bf16.msra.mxu0 %v492
      %504 = vmatprep.subr.bf16.mxu0 0
      %505 = vmatpush1.bf16.msra.mxu0 0
      %506 = vmatprep.subr.bf16.mxu0 0
      %507 = vmatpush1.bf16.msra.mxu0 0
      %508 = vmatprep.subr.bf16.mxu0 0
      %509 = vmatpush1.bf16.msra.mxu0 0
      %510 = vmatprep.subr.bf16.mxu0 0
      %511 = vmatpush1.bf16.msra.mxu0 0
      %512 = vmatprep.subr.bf16.mxu0 0
      %513 = vmatpush1.bf16.msra.mxu0 0
      %514 = vmatprep.subr.bf16.mxu0 0
      %515 = vmatpush1.bf16.msra.mxu0 0
      %516 = vmatprep.subr.bf16.mxu0 0
      %517 = vmatpush1.bf16.msra.mxu0 0
      %518 = vmatprep.subr.bf16.mxu0 0
      %519 = vmatpush1.bf16.msra.mxu0 0
      %520 = vmatprep.subr.bf16.mxu0 0
      %521 = vmatpush1.bf16.msra.mxu0 0
      %522 = vmatprep.subr.bf16.mxu0 0
      %523 = vmatpush1.bf16.msra.mxu0 0
      %524 = vmatprep.subr.bf16.mxu0 0
      %525 = vmatpush1.bf16.msra.mxu0 0
      %526 = vmatprep.mubr.bf16.mxu0 0
      %527 = vmatmul.mubr.bf16.gmra.mrb[0].mxu0 %v443
      %v528 = vpop.f32.mrb[0].mxu0
      %v529 = vadd.f32 %v332, %v528
      %v530 = vpop.f32.mrb[0].mxu0
      %v531 = vpop.f32.mrb[0].mxu0
      %v532 = vadd.f32 %v332, %v531
      %v533 = vpop.f32.mrb[0].mxu0
      %534 = vmatprep.mubr.bf16.mxu0 0
      %535 = vmatmul.mubr.bf16.gmra.mrb[0].mxu0 %v446
      %v536 = vpop.f32.mrb[0].mxu0
      %v537 = vadd.f32 %v332, %v536
      %v538 = vpop.f32.mrb[0].mxu0
      %v539 = vpop.f32.mrb[0].mxu0
      %v540 = vadd.f32 %v332, %v539
      %v541 = vpop.f32.mrb[0].mxu0
      %542 = vmatprep.mubr.bf16.mxu0 0
      %543 = vmatmul.mubr.bf16.gmra.mrb[0].mxu0 %v449
      %v544 = vpop.f32.mrb[0].mxu0
      %v545 = vadd.f32 %v332, %v544
      %v546 = vpop.f32.mrb[0].mxu0
      %v547 = vpop.f32.mrb[0].mxu0
      %v548 = vadd.f32 %v332, %v547
      %v549 = vpop.f32.mrb[0].mxu0
      %550 = vmatprep.mubr.bf16.mxu0 0
      %551 = vmatmul.mubr.bf16.gmra.mrb[0].mxu0 %v452
      %v552 = vpop.f32.mrb[0].mxu0
      %v553 = vadd.f32 %v332, %v552
      %v554 = vpop.f32.mrb[0].mxu0
      %v555 = vpop.f32.mrb[0].mxu0
      %v556 = vadd.f32 %v332, %v555
      %v557 = vpop.f32.mrb[0].mxu0
      %558 = vmatprep.mubr.bf16.mxu0 0
      %559 = vmatmul.mubr.bf16.gmra.mrb[0].mxu0 %v455
      %v560 = vpop.f32.mrb[0].mxu0
      %v561 = vadd.f32 %v332, %v560
      %v562 = vpop.f32.mrb[0].mxu0
      %v563 = vpop.f32.mrb[0].mxu0
      %v564 = vadd.f32 %v332, %v563
      %v565 = vpop.f32.mrb[0].mxu0
      %566 = vmatprep.mubr.bf16.mxu0 0
      %567 = vmatmul.mubr.bf16.gmra.mrb[0].mxu0 %v458
      %v568 = vpop.f32.mrb[0].mxu0
      %v569 = vadd.f32 %v332, %v568
      %v570 = vpop.f32.mrb[0].mxu0
      %v571 = vpop.f32.mrb[0].mxu0
      %v572 = vadd.f32 %v332, %v571
      %v573 = vpop.f32.mrb[0].mxu0
      %574 = vmatprep.mubr.bf16.mxu0 0
      %575 = vmatmul.mubr.bf16.gmra.mrb[0].mxu0 %v461
      %v576 = vpop.f32.mrb[0].mxu0
      %v577 = vadd.f32 %v332, %v576
      %v578 = vpop.f32.mrb[0].mxu0
      %v579 = vpop.f32.mrb[0].mxu0
      %v580 = vadd.f32 %v332, %v579
      %v581 = vpop.f32.mrb[0].mxu0
      %582 = vmatprep.mubr.bf16.mxu0 0
      %583 = vmatmul.mubr.bf16.gmra.mrb[0].mxu0 %v464
      %v584 = vpop.f32.mrb[0].mxu0
      %v585 = vadd.f32 %v332, %v584
      %v586 = vpop.f32.mrb[0].mxu0
      %v587 = vpop.f32.mrb[0].mxu0
      %v588 = vadd.f32 %v332, %v587
      %v589 = vpop.f32.mrb[0].mxu0
      %590 = vmatprep.mubr.bf16.mxu0 0
      %591 = vmatmul.mubr.bf16.gmra.mrb[0].mxu0 %v467
      %v592 = vpop.f32.mrb[0].mxu0
      %v593 = vadd.f32 %v332, %v592
      %v594 = vpop.f32.mrb[0].mxu0
      %v595 = vpop.f32.mrb[0].mxu0
      %v596 = vadd.f32 %v332, %v595
      %v597 = vpop.f32.mrb[0].mxu0
      %598 = vmatprep.mubr.bf16.mxu0 0
      %599 = vmatmul.mubr.bf16.gmra.mrb[0].mxu0 %v470
      %v600 = vpop.f32.mrb[0].mxu0
      %v601 = vadd.f32 %v332, %v600
      %v602 = vpop.f32.mrb[0].mxu0
      %v603 = vpop.f32.mrb[0].mxu0
      %v604 = vadd.f32 %v332, %v603
      %v605 = vpop.f32.mrb[0].mxu0
      %606 = vmatprep.mubr.bf16.mxu0 0
      %607 = vmatmul.mubr.bf16.gmra.mrb[0].mxu0 %v473
      %v608 = vpop.f32.mrb[0].mxu0
      %v609 = vadd.f32 %v332, %v608
      %v610 = vpop.f32.mrb[0].mxu0
      %v611 = vpop.f32.mrb[0].mxu0
      %v612 = vadd.f32 %v332, %v611
      %v613 = vpop.f32.mrb[0].mxu0
      %614 = vmatprep.mubr.bf16.mxu0 0
      %615 = vmatmul.mubr.bf16.gmra.mrb[0].mxu0 %v476
      %v616 = vpop.f32.mrb[0].mxu0
      %v617 = vadd.f32 %v332, %v616
      %v618 = vpop.f32.mrb[0].mxu0
      %v619 = vpop.f32.mrb[0].mxu0
      %v620 = vadd.f32 %v332, %v619
      %v621 = vpop.f32.mrb[0].mxu0
      %622 = vmatprep.mubr.bf16.mxu0 0
      %623 = vmatmul.mubr.bf16.gmra.mrb[0].mxu0 %v479
      %v624 = vpop.f32.mrb[0].mxu0
      %v625 = vadd.f32 %v332, %v624
      %v626 = vpop.f32.mrb[0].mxu0
      %v627 = vpop.f32.mrb[0].mxu0
      %v628 = vadd.f32 %v332, %v627
      %v629 = vpop.f32.mrb[0].mxu0
      %630 = vmatprep.mubr.bf16.mxu0 0
      %631 = vmatmul.mubr.bf16.gmra.mrb[0].mxu0 %v482
      %v632 = vpop.f32.mrb[0].mxu0
      %v633 = vadd.f32 %v332, %v632
      %v634 = vpop.f32.mrb[0].mxu0
      %v635 = vpop.f32.mrb[0].mxu0
      %v636 = vadd.f32 %v332, %v635
      %v637 = vpop.f32.mrb[0].mxu0
      %638 = vmatprep.mubr.bf16.mxu0 0
      %639 = vmatmul.mubr.bf16.gmra.mrb[0].mxu0 %v485
      %v640 = vpop.f32.mrb[0].mxu0
      %v641 = vadd.f32 %v332, %v640
      %v642 = vpop.f32.mrb[0].mxu0
      %v643 = vpop.f32.mrb[0].mxu0
      %v644 = vadd.f32 %v332, %v643
      %v645 = vpop.f32.mrb[0].mxu0
      %646 = vmatprep.mubr.bf16.mxu0 0
      %647 = vmatmul.mubr.bf16.gmra.mrb[0].mxu0 %v488
      %v648 = vpop.f32.mrb[0].mxu0
      %v649 = vadd.f32 %v332, %v648
      %v650 = vpop.f32.mrb[0].mxu0
      %v651 = vpop.f32.mrb[0].mxu0
      %v652 = vadd.f32 %v332, %v651
      %v653 = vpop.f32.mrb[0].mxu0
      %654 = vdwg.mxu0
      %v655 = vld [vmem:[%s274] sm:$0xf]
      %v656 = vld [vmem:[%s274 + $0x4] sm:$0xf]
      %v657 = vld [vmem:[%s274 + $0x8] sm:$0xf]
      %v658 = vld [vmem:[%s274 + $0xc] sm:$0xf]
      %v659 = vld [vmem:[%s274 + $0x10] sm:$0xf]
      %v660 = vld [vmem:[%s274 + $0x14] sm:$0xf]
      %v661 = vld [vmem:[%s274 + $0x18] sm:$0xf]
      %v662 = vld [vmem:[%s274 + $0x1c] sm:$0xf]
      %v663 = vld [vmem:[%s274 + $0x20] sm:$0xf]
      %v664 = vld [vmem:[%s274 + $0x24] sm:$0xf]
      %v665 = vld [vmem:[%s274 + $0x28] sm:$0xf]
      %v666 = vld [vmem:[%s274 + $0x2c] sm:$0xf]
      %v667 = vld [vmem:[%s274 + $0x30] sm:$0xf]
      %v668 = vld [vmem:[%s274 + $0x34] sm:$0xf]
      %v669 = vld [vmem:[%s274 + $0x38] sm:$0xf]
      %v670 = vld [vmem:[%s274 + $0x3c] sm:$0xf]
      %v671 = vld [vmem:[%s274 + $0x40] sm:$0xf]
      %v672 = vld [vmem:[%s274 + $0x44] sm:$0xf]
      %v673 = vld [vmem:[%s274 + $0x48] sm:$0xf]
      %v674 = vld [vmem:[%s274 + $0x4c] sm:$0xf]
      %v675 = vld [vmem:[%s274 + $0x50] sm:$0xf]
      %v676 = vld [vmem:[%s274 + $0x54] sm:$0xf]
      %v677 = vld [vmem:[%s274 + $0x58] sm:$0xf]
      %v678 = vld [vmem:[%s274 + $0x5c] sm:$0xf]
      %v679 = vld [vmem:[%s274 + $0x60] sm:$0xf]
      %v680 = vld [vmem:[%s274 + $0x64] sm:$0xf]
      %v681 = vld [vmem:[%s274 + $0x68] sm:$0xf]
      %v682 = vld [vmem:[%s274 + $0x6c] sm:$0xf]
      %v683 = vld [vmem:[%s274 + $0x70] sm:$0xf]
      %v684 = vld [vmem:[%s274 + $0x74] sm:$0xf]
      %v685 = vld [vmem:[%s274 + $0x78] sm:$0xf]
      %v686 = vld [vmem:[%s274 + $0x7c] sm:$0xf]
      %v687 = vunpack.c.l.bf16 %v655
      %v688 = vunpack.c.l.bf16 %v656
      %v689 = vunpack.c.l.bf16 %v657
      %v690 = vunpack.c.l.bf16 %v658
      %v691 = vunpack.c.l.bf16 %v659
      %v692 = vunpack.c.l.bf16 %v660
      %v693 = vunpack.c.l.bf16 %v661
      %v694 = vunpack.c.l.bf16 %v662
      %v695 = vunpack.c.l.bf16 %v663
      %v696 = vunpack.c.l.bf16 %v664
      %v697 = vunpack.c.l.bf16 %v665
      %v698 = vunpack.c.l.bf16 %v666
      %v699 = vunpack.c.l.bf16 %v667
      %v700 = vunpack.c.l.bf16 %v668
      %v701 = vunpack.c.l.bf16 %v669
      %v702 = vunpack.c.l.bf16 %v670
      %v703 = vunpack.c.l.bf16 %v671
      %v704 = vunpack.c.l.bf16 %v672
      %v705 = vunpack.c.l.bf16 %v673
      %v706 = vunpack.c.l.bf16 %v674
      %v707 = vunpack.c.l.bf16 %v675
      %v708 = vunpack.c.l.bf16 %v676
      %v709 = vunpack.c.l.bf16 %v677
      %v710 = vunpack.c.l.bf16 %v678
      %v711 = vunpack.c.l.bf16 %v679
      %v712 = vunpack.c.l.bf16 %v680
      %v713 = vunpack.c.l.bf16 %v681
      %v714 = vunpack.c.l.bf16 %v682
      %v715 = vunpack.c.l.bf16 %v683
      %v716 = vunpack.c.l.bf16 %v684
      %v717 = vunpack.c.l.bf16 %v685
      %v718 = vunpack.c.l.bf16 %v686
      %v719 = vadd.f32 %v529, %v687
      %v720 = vadd.f32 %v532, %v688
      %v721 = vadd.f32 %v537, %v689
      %v722 = vadd.f32 %v540, %v690
      %v723 = vadd.f32 %v545, %v691
      %v724 = vadd.f32 %v548, %v692
      %v725 = vadd.f32 %v553, %v693
      %v726 = vadd.f32 %v556, %v694
      %v727 = vadd.f32 %v561, %v695
      %v728 = vadd.f32 %v564, %v696
      %v729 = vadd.f32 %v569, %v697
      %v730 = vadd.f32 %v572, %v698
      %v731 = vadd.f32 %v577, %v699
      %v732 = vadd.f32 %v580, %v700
      %v733 = vadd.f32 %v585, %v701
      %v734 = vadd.f32 %v588, %v702
      %v735 = vadd.f32 %v593, %v703
      %v736 = vadd.f32 %v596, %v704
      %v737 = vadd.f32 %v601, %v705
      %v738 = vadd.f32 %v604, %v706
      %v739 = vadd.f32 %v609, %v707
      %v740 = vadd.f32 %v612, %v708
      %v741 = vadd.f32 %v617, %v709
      %v742 = vadd.f32 %v620, %v710
      %v743 = vadd.f32 %v625, %v711
      %v744 = vadd.f32 %v628, %v712
      %v745 = vadd.f32 %v633, %v713
      %v746 = vadd.f32 %v636, %v714
      %v747 = vadd.f32 %v641, %v715
      %v748 = vadd.f32 %v644, %v716
      %v749 = vadd.f32 %v649, %v717
      %v750 = vadd.f32 %v652, %v718
      %751 = vst [vmem:[%s283] sm:$0xff] %v719
      %752 = vst [vmem:[%s283 + $0x8] sm:$0xff] %v720
      %753 = vst [vmem:[%s283 + $0x10] sm:$0xff] %v721
      %754 = vst [vmem:[%s283 + $0x18] sm:$0xff] %v722
      %755 = vst [vmem:[%s283 + $0x20] sm:$0xff] %v723
      %756 = vst [vmem:[%s283 + $0x28] sm:$0xff] %v724
      %757 = vst [vmem:[%s283 + $0x30] sm:$0xff] %v725
      %758 = vst [vmem:[%s283 + $0x38] sm:$0xff] %v726
      %759 = vst [vmem:[%s283 + $0x40] sm:$0xff] %v727
      %760 = vst [vmem:[%s283 + $0x48] sm:$0xff] %v728
      %761 = vst [vmem:[%s283 + $0x50] sm:$0xff] %v729
      %762 = vst [vmem:[%s283 + $0x58] sm:$0xff] %v730
      %763 = vst [vmem:[%s283 + $0x60] sm:$0xff] %v731
      %764 = vst [vmem:[%s283 + $0x68] sm:$0xff] %v732
      %765 = vst [vmem:[%s283 + $0x70] sm:$0xff] %v733
      %766 = vst [vmem:[%s283 + $0x78] sm:$0xff] %v734
      %767 = vst [vmem:[%s283 + $0x80] sm:$0xff] %v735
      %768 = vst [vmem:[%s283 + $0x88] sm:$0xff] %v736
      %769 = vst [vmem:[%s283 + $0x90] sm:$0xff] %v737
      %770 = vst [vmem:[%s283 + $0x98] sm:$0xff] %v738
      %771 = vst [vmem:[%s283 + $0xa0] sm:$0xff] %v739
      %772 = vst [vmem:[%s283 + $0xa8] sm:$0xff] %v740
      %773 = vst [vmem:[%s283 + $0xb0] sm:$0xff] %v741
      %774 = vst [vmem:[%s283 + $0xb8] sm:$0xff] %v742
      %775 = vst [vmem:[%s283 + $0xc0] sm:$0xff] %v743
      %776 = vst [vmem:[%s283 + $0xc8] sm:$0xff] %v744
      %777 = vst [vmem:[%s283 + $0xd0] sm:$0xff] %v745
      %778 = vst [vmem:[%s283 + $0xd8] sm:$0xff] %v746
      %779 = vst [vmem:[%s283 + $0xe0] sm:$0xff] %v747
      %780 = vst [vmem:[%s283 + $0xe8] sm:$0xff] %v748
      %781 = vst [vmem:[%s283 + $0xf0] sm:$0xff] %v749
      %782 = vst [vmem:[%s283 + $0xf8] sm:$0xff] %v750
      %s783 = smul.u32 32, %s19
      %p784 = scmp.lt.s32.totalorder %s783, 63
      %s785 = scalar_select %p784, %s783, 63
      %p786 = scmp.lt.s32.totalorder %s20, 0
      %s787 = scalar_select %p786, %s20, 0
      %s788 = sadd.s32 %s787, %s785
      %s789 = smul.addr %s788, 8
      %s790 = scalar_lea.vmem %s4, %s789
      // Predicated region
      $region37: #{wide_block_forward.7} parent=35 // pred_check
        %p791 = pneg %p153
      $region38: #{wide_block_forward.7} parent=35 // pred_check_branch
        %793 = sbr.rel (%p791) target = $region40
      $region39: #{wide_block_forward.7} parent=35 // pred_region
        %s794 = smul.u32 32, %s19
      $region40: #{wide_block_forward.7} parent=35 // pred_fallthru
        _
    $region36: #{wide_block_forward.7} parent=5 // pred_fallthru
      _
    %p795 = scmp.le.s32.totalorder 2, %s10
    // Predicated region
    $region41: #{wide_block_forward.7} parent=5 // pred_check
      %p796 = pneg %p795
    $region42: #{wide_block_forward.7} parent=5 // pred_check_branch
      %798 = sbr.rel (%p796) target = $region44
    $region43: #{wide_block_forward.7} parent=5 // pred_region
      %s799 = ssub.s32 %s10, 2
      // Predicated region
      $region45: #{wide_block_forward.7} parent=43 // pred_check
        %p800 = pneg %p159
      $region46: #{wide_block_forward.7} parent=43 // pred_check_branch
        %802 = sbr.rel (%p800) target = $region48
      $region47: #{wide_block_forward.7} parent=43 // pred_region
        %s803 = smul.u32 32, %s21
        %p804 = scmp.lt.s32.totalorder %s803, 63
        %s805 = scalar_select %p804, %s803, 63
        %p806 = scmp.lt.s32.totalorder %s22, 0
        %s807 = scalar_select %p806, %s22, 0
        %s808 = sadd.s32 %s807, %s805
        %s809 = smul.addr %s808, 8
        %s810 = scalar_lea.vmem %s4, %s809
      $region48: #{wide_block_forward.7} parent=43 // pred_fallthru
        _
    $region44: #{wide_block_forward.7} parent=5 // pred_fallthru
      _
  $region6: #{wide_block_forward.7} parent=0 // loop_footer
    %s14 = sadd.s32 1, %s10
  $region7: #{wide_block_forward.7} parent=0 // loop_footer_branch
    %9 = sbr.rel target = $region3
  $region8: #{wide_block_forward.7} parent=0 // loop_exit
    _

// kernel: wide_block_forward.6
$region0: #{wide_block_forward.6}
  #allocation0 [shape = 'u32[]', space=smem, size = 0x4, offset = 0x4, fixed_abs, tag = 'smem constant byte address 0x4 - core index']
  #allocation1 [shape = 'u32[144,128]{1,0:T(1,128)}', space=vmem, size = 0x12000, scoped, tag = 'internal scratch']
  %s0 = inlined_call_operand.vmem [shape: bf16[512,8], index: 0, kind: input, shape index: {}]
  %s1 = inlined_call_operand.vmem [shape: bf16[8,128], index: 1, kind: input, shape index: {}]
  %s2 = inlined_call_operand.vmem [shape: f32[1,128], index: 2, kind: input, shape index: {}]
  %s3 = inlined_call_operand.vmem [shape: bf16[512,128], index: 3, kind: output, shape index: {}]
  %s4 = sld [smem:[#allocation0]]
  $region45: #{wide_block_forward.6} parent=0
    _
  %s6 = ssub.s32 1, %s4
  %s7 = scalar_select 0, %s6, %s4
  loop: start=0, step=1, limit=4
  $region2: #{wide_block_forward.6} parent=0 // loop_pre_header
    _
  $region3: #{wide_block_forward.6} parent=0 // loop_header
    %s9 = sphi 0, %s13
    %p10 = scmp.ge.s32.totalorder %s9, 4
    %s16 = sphi 0, %s28
    %s17 = sphi 0, %s24
    %s18 = sphi 0, %s16
    %s19 = sphi 0, %s17
    %s20 = sphi 0, %s18
    %s21 = sphi 0, %s19
    %s31 = sphi 0, %s33
    %s34 = sphi 0, %s31
    %s35 = sphi 0, %s34
    %s51 = sphi 0, %s35
    %s57 = sphi 0, %s59
    %s60 = sphi 0, %s57
    %s61 = sphi 0, %s60
    %s77 = sphi 0, %s61
    %s83 = sphi 0, %s85
    %s86 = sphi 0, %s83
    %s87 = sphi 0, %s86
    %s103 = sphi 0, %s87
    %s111 = sphi 0, %s113
    %s114 = sphi 0, %s111
    %s115 = sphi 0, %s114
    %s131 = sphi 0, %s115
  $region4: #{wide_block_forward.6} parent=0 // loop_header_branch
    %12 = sbr.rel (%p10) target = $region8
  $region5: #{wide_block_forward.6} parent=0 // loop_body
    %s14 = ssub.s32 %s9, 1
    %s15 = ssub.s32 %s9, 2
    %s22 = sadd.s32 1, %s17
    %p23 = scmp.ge.s32.totalorder %s22, 1
    %s24 = scalar_select %p23, 0, %s22
    %s25 = sadd.s32 1, %s16
    %s26 = scalar_select %p23, %s25, %s16
    %p27 = scmp.ge.s32.totalorder %s26, 2
    %s28 = scalar_select %p27, 0, %s26
    %s29 = ssub.s32 %s16, %s28
    %p30 = scmp.eq.s32.totalorder %s29, 0
    %s32 = sadd.s32 %s31, 1
    %s33 = scalar_select %p30, %s31, %s32
    %p36 = pneg %p30
    %p37 = scmp.eq.s32.totalorder %s9, 1
    %p38 = por %p36, %p37
    %p39 = scmp.ne.s32.totalorder %s31, %s34
    %p40 = scmp.eq.s32.totalorder %s9, 0
    %p41 = por %p39, %p40
    %p42 = scmp.ne.s32.totalorder %s31, %s34
    %p43 = scmp.eq.s32.totalorder %s14, 1
    %p44 = por %p42, %p43
    %p45 = scmp.ne.s32.totalorder %s34, %s35
    %p46 = scmp.eq.s32.totalorder %s14, 0
    %p47 = por %p45, %p46
    %p48 = scmp.ne.s32.totalorder %s34, %s35
    %p49 = scmp.eq.s32.totalorder %s15, 1
    %p50 = por %p48, %p49
    %p52 = scmp.ne.s32.totalorder %s35, %s51
    %p53 = scmp.eq.s32.totalorder %s15, 0
    %p54 = por %p52, %p53
    %s55 = ssub.s32 %s17, %s24
    %p56 = scmp.eq.s32.totalorder %s55, 0
    %s58 = sadd.s32 %s57, 1
    %s59 = scalar_select %p56, %s57, %s58
    %p62 = pneg %p56
    %p63 = scmp.eq.s32.totalorder %s9, 1
    %p64 = por %p62, %p63
    %p65 = scmp.ne.s32.totalorder %s57, %s60
    %p66 = scmp.eq.s32.totalorder %s9, 0
    %p67 = por %p65, %p66
    %p68 = scmp.ne.s32.totalorder %s57, %s60
    %p69 = scmp.eq.s32.totalorder %s14, 1
    %p70 = por %p68, %p69
    %p71 = scmp.ne.s32.totalorder %s60, %s61
    %p72 = scmp.eq.s32.totalorder %s14, 0
    %p73 = por %p71, %p72
    %p74 = scmp.ne.s32.totalorder %s60, %s61
    %p75 = scmp.eq.s32.totalorder %s15, 1
    %p76 = por %p74, %p75
    %p78 = scmp.ne.s32.totalorder %s61, %s77
    %p79 = scmp.eq.s32.totalorder %s15, 0
    %p80 = por %p78, %p79
    %s81 = ssub.s32 %s17, %s24
    %p82 = scmp.eq.s32.totalorder %s81, 0
    %s84 = sadd.s32 %s83, 1
    %s85 = scalar_select %p82, %s83, %s84
    %p88 = pneg %p82
    %p89 = scmp.eq.s32.totalorder %s9, 1
    %p90 = por %p88, %p89
    %p91 = scmp.ne.s32.totalorder %s83, %s86
    %p92 = scmp.eq.s32.totalorder %s9, 0
    %p93 = por %p91, %p92
    %p94 = scmp.ne.s32.totalorder %s83, %s86
    %p95 = scmp.eq.s32.totalorder %s14, 1
    %p96 = por %p94, %p95
    %p97 = scmp.ne.s32.totalorder %s86, %s87
    %p98 = scmp.eq.s32.totalorder %s14, 0
    %p99 = por %p97, %p98
    %p100 = scmp.ne.s32.totalorder %s86, %s87
    %p101 = scmp.eq.s32.totalorder %s15, 1
    %p102 = por %p100, %p101
    %p104 = scmp.ne.s32.totalorder %s87, %s103
    %p105 = scmp.eq.s32.totalorder %s15, 0
    %p106 = por %p104, %p105
    %s107 = ssub.s32 %s16, %s28
    %s108 = ssub.s32 %s17, %s24
    %s109 = sor.u32 %s107, %s108
    %p110 = scmp.eq.s32.totalorder %s109, 0
    %s112 = sadd.s32 %s111, 1
    %s113 = scalar_select %p110, %s111, %s112
    %p116 = pneg %p110
    %p117 = scmp.eq.s32.totalorder %s9, 1
    %p118 = por %p116, %p117
    %p119 = scmp.ne.s32.totalorder %s111, %s114
    %p120 = scmp.eq.s32.totalorder %s9, 0
    %p121 = por %p119, %p120
    %p122 = scmp.ne.s32.totalorder %s111, %s114
    %p123 = scmp.eq.s32.totalorder %s14, 1
    %p124 = por %p122, %p123
    %p125 = scmp.ne.s32.totalorder %s114, %s115
    %p126 = scmp.eq.s32.totalorder %s14, 0
    %p127 = por %p125, %p126
    %p128 = scmp.ne.s32.totalorder %s114, %s115
    %p129 = scmp.eq.s32.totalorder %s15, 1
    %p130 = por %p128, %p129
    %p132 = scmp.ne.s32.totalorder %s115, %s131
    %p133 = scmp.eq.s32.totalorder %s15, 0
    %p134 = por %p132, %p133
    %p135 = scmp.le.s32.totalorder 1, %s9
    %p136 = scmp.lt.s32.totalorder %s9, 3
    %p137 = pnand %p135, %p136
    %p138 = pneg %p137
    // Predicated region
    $region9: #{wide_block_forward.6} parent=5 // pred_check
      _
    $region10: #{wide_block_forward.6} parent=5 // pred_check_branch
      %140 = sbr.rel (%p137) target = $region12
    $region11: #{wide_block_forward.6} parent=5 // pred_region
      %s141 = ssub.s32 %s9, 1
      // Predicated region
      $region13: #{wide_block_forward.6} parent=11 // pred_check
        %p142 = pneg %p73
      $region14: #{wide_block_forward.6} parent=11 // pred_check_branch
        %144 = sbr.rel (%p142) target = $region16
      $region15: #{wide_block_forward.6} parent=11 // pred_region
        %p145 = scmp.lt.s32.totalorder %s19, 0
        %s146 = scalar_select %p145, %s19, 0
        %s147 = smul.addr %s146, 4
        %s148 = scalar_lea.vmem %s1, %s147
      $region16: #{wide_block_forward.6} parent=11 // pred_fallthru
        _
      // Predicated region
      $region17: #{wide_block_forward.6} parent=11 // pred_check
        %p149 = pneg %p99
      $region18: #{wide_block_forward.6} parent=11 // pred_check_branch
        %151 = sbr.rel (%p149) target = $region20
      $region19: #{wide_block_forward.6} parent=11 // pred_region
        %p152 = scmp.lt.s32.totalorder %s19, 0
        %s153 = scalar_select %p152, %s19, 0
        %s154 = scalar_lea.vmem %s2, %s153
      $region20: #{wide_block_forward.6} parent=11 // pred_fallthru
        _
    $region12: #{wide_block_forward.6} parent=5 // pred_fallthru
      _
    %p155 = scmp.lt.s32.totalorder %s9, 2
    // Predicated region
    $region21: #{wide_block_forward.6} parent=5 // pred_check
      %p156 = pneg %p155
    $region22: #{wide_block_forward.6} parent=5 // pred_check_branch
      %158 = sbr.rel (%p156) target = $region24
    $region23: #{wide_block_forward.6} parent=5 // pred_region
      // Predicated region
      $region25: #{wide_block_forward.6} parent=23 // pred_check
        %p159 = pneg %p41
      $region26: #{wide_block_forward.6} parent=23 // pred_check_branch
        %161 = sbr.rel (%p159) target = $region28
      $region27: #{wide_block_forward.6} parent=23 // pred_region
        %s162 = smul.u32 32, %s16
        %p163 = scmp.lt.s32.totalorder %s162, 63
        %s164 = scalar_select %p163, %s162, 63
        %s165 = smul.addr %s164, 4
        %s166 = scalar_lea.vmem %s0, %s165
        %s167 = smul.u32 32, %s16
      $region28: #{wide_block_forward.6} parent=23 // pred_fallthru
        _
    $region24: #{wide_block_forward.6} parent=5 // pred_fallthru
      _
    %p168 = scmp.le.s32.totalorder 1, %s9
    %p169 = scmp.lt.s32.totalorder %s9, 3
    %p170 = pnand %p168, %p169
    %p171 = pneg %p170
    // Predicated region
    $region29: #{wide_block_forward.6} parent=5 // pred_check
      _
    $region30: #{wide_block_forward.6} parent=5 // pred_check_branch
      %173 = sbr.rel (%p170) target = $region32
    $region31: #{wide_block_forward.6} parent=5 // pred_region
      %s174 = ssub.s32 %s9, 1
      %s175 = smul.u32 32, %s18
      %p176 = scmp.lt.s32.totalorder %s175, 63
      %s177 = scalar_select %p176, %s175, 63
      %s178 = smul.addr %s177, 4
      %s179 = scalar_lea.vmem %s0, %s178
      %p180 = pneg %p47
      %p181 = pneg %p44
      %p182 = scmp.lt.s32.totalorder %s19, 0
      %s183 = scalar_select %p182, %s19, 0
      %s184 = smul.addr %s183, 4
      %s185 = scalar_lea.vmem %s1, %s184
      %p186 = pneg %p73
      %p187 = pneg %p70
      %p188 = scmp.lt.s32.totalorder %s19, 0
      %s189 = scalar_select %p188, %s19, 0
      %s190 = scalar_lea.vmem %s2, %s189
      %p191 = pneg %p99
      %p192 = pneg %p96
      %p193 = pneg %p127
      %p194 = pneg %p124
      %s195 = smul.u32 32, %s18
      %p196 = scmp.lt.s32.totalorder %s195, 63
      %s197 = scalar_select %p196, %s195, 63
      %p198 = scmp.lt.s32.totalorder %s19, 0
      %s199 = scalar_select %p198, %s19, 0
      %s200 = sadd.s32 %s199, %s197
      %s201 = smul.addr %s200, 4
      %s202 = scalar_lea.vmem %s3, %s201
      %s203 = smul.u32 32, %s18
      %p204 = scmp.lt.s32.totalorder %s203, 63
      %s205 = scalar_select %p204, %s203, 63
      %s206 = smul.addr %s205, 4
      %s207 = scalar_lea.vmem %s0, %s206
      %s208 = smul.u32 32, %s18
      %p209 = scmp.lt.s32.totalorder %s19, 0
      %s210 = scalar_select %p209, %s19, 0
      %s211 = smul.addr %s210, 4
      %s212 = scalar_lea.vmem %s1, %s211
      %p213 = scmp.lt.s32.totalorder %s19, 0
      %s214 = scalar_select %p213, %s19, 0
      %s215 = scalar_lea.vmem %s2, %s214
      %s216 = smul.u32 32, %s18
      %p217 = scmp.lt.s32.totalorder %s216, 63
      %s218 = scalar_select %p217, %s216, 63
      %p219 = scmp.lt.s32.totalorder %s19, 0
      %s220 = scalar_select %p219, %s19, 0
      %s221 = sadd.s32 %s220, %s218
      %s222 = smul.addr %s221, 4
      %s223 = scalar_lea.vmem %s3, %s222
      %s224 = smul.u32 32, %s18
      %v226 = vld [vmem:[%s207] sm:$0xf]
      %v227 = vld [vmem:[%s207 + $0x4] sm:$0xf]
      %v228 = vld [vmem:[%s207 + $0x8] sm:$0xf]
      %v229 = vld [vmem:[%s207 + $0xc] sm:$0xf]
      %v230 = vld [vmem:[%s207 + $0x10] sm:$0xf]
      %v231 = vld [vmem:[%s207 + $0x14] sm:$0xf]
      %v232 = vld [vmem:[%s207 + $0x18] sm:$0xf]
      %v233 = vld [vmem:[%s207 + $0x1c] sm:$0xf]
      %v234 = vld [vmem:[%s207 + $0x20] sm:$0xf]
      %v235 = vld [vmem:[%s207 + $0x24] sm:$0xf]
      %v236 = vld [vmem:[%s207 + $0x28] sm:$0xf]
      %v237 = vld [vmem:[%s207 + $0x2c] sm:$0xf]
      %v238 = vld [vmem:[%s207 + $0x30] sm:$0xf]
      %v239 = vld [vmem:[%s207 + $0x34] sm:$0xf]
      %v240 = vld [vmem:[%s207 + $0x38] sm:$0xf]
      %v241 = vld [vmem:[%s207 + $0x3c] sm:$0xf]
      %v242 = vld [vmem:[%s207 + $0x40] sm:$0xf]
      %v243 = vld [vmem:[%s207 + $0x44] sm:$0xf]
      %v244 = vld [vmem:[%s207 + $0x48] sm:$0xf]
      %v245 = vld [vmem:[%s207 + $0x4c] sm:$0xf]
      %v246 = vld [vmem:[%s207 + $0x50] sm:$0xf]
      %v247 = vld [vmem:[%s207 + $0x54] sm:$0xf]
      %v248 = vld [vmem:[%s207 + $0x58] sm:$0xf]
      %v249 = vld [vmem:[%s207 + $0x5c] sm:$0xf]
      %v250 = vld [vmem:[%s207 + $0x60] sm:$0xf]
      %v251 = vld [vmem:[%s207 + $0x64] sm:$0xf]
      %v252 = vld [vmem:[%s207 + $0x68] sm:$0xf]
      %v253 = vld [vmem:[%s207 + $0x6c] sm:$0xf]
      %v254 = vld [vmem:[%s207 + $0x70] sm:$0xf]
      %v255 = vld [vmem:[%s207 + $0x74] sm:$0xf]
      %v256 = vld [vmem:[%s207 + $0x78] sm:$0xf]
      %v257 = vld [vmem:[%s207 + $0x7c] sm:$0xf]
      %v258 = vld [vmem:[%s212] sm:$0xf]
      %v259 = vld [vmem:[%s215] sm:$0x1]
      %v261 = vlaneseq
      %v262 = vshrl.u32 %v261, 7
      %v263 = vsub.s32 0, %v262
      %v264 = vrot.slane %v259, %v263
      %v298 = vunpack.c.l.b16 %v226
      %v299 = vunpack.c.l.b16 %v227
      %v300 = vunpack.c.l.b16 %v228
      %v301 = vunpack.c.l.b16 %v229
      %v302 = vunpack.c.l.b16 %v230
      %v303 = vunpack.c.l.b16 %v231
      %v304 = vunpack.c.l.b16 %v232
      %v305 = vunpack.c.l.b16 %v233
      %v306 = vunpack.c.l.b16 %v234
      %v307 = vunpack.c.l.b16 %v235
      %v308 = vunpack.c.l.b16 %v236
      %v309 = vunpack.c.l.b16 %v237
      %v310 = vunpack.c.l.b16 %v238
      %v311 = vunpack.c.l.b16 %v239
      %v312 = vunpack.c.l.b16 %v240
      %v313 = vunpack.c.l.b16 %v241
      %v314 = vunpack.c.l.b16 %v242
      %v315 = vunpack.c.l.b16 %v243
      %v316 = vunpack.c.l.b16 %v244
      %v317 = vunpack.c.l.b16 %v245
      %v318 = vunpack.c.l.b16 %v246
      %v319 = vunpack.c.l.b16 %v247
      %v320 = vunpack.c.l.b16 %v248
      %v321 = vunpack.c.l.b16 %v249
      %v322 = vunpack.c.l.b16 %v250
      %v323 = vunpack.c.l.b16 %v251
      %v324 = vunpack.c.l.b16 %v252
      %v325 = vunpack.c.l.b16 %v253
      %v326 = vunpack.c.l.b16 %v254
      %v327 = vunpack.c.l.b16 %v255
      %v328 = vunpack.c.l.b16 %v256
      %v329 = vunpack.c.l.b16 %v257
      %v330 = vpack.c.b16 %v299, %v298
      %v331 = vpack.c.b16 %v301, %v300
      %v332 = vpack.c.b16 %v303, %v302
      %v333 = vpack.c.b16 %v305, %v304
      %v334 = vpack.c.b16 %v307, %v306
      %v335 = vpack.c.b16 %v309, %v308
      %v336 = vpack.c.b16 %v311, %v310
      %v337 = vpack.c.b16 %v313, %v312
      %v338 = vpack.c.b16 %v315, %v314
      %v339 = vpack.c.b16 %v317, %v316
      %v340 = vpack.c.b16 %v319, %v318
      %v341 = vpack.c.b16 %v321, %v320
      %v342 = vpack.c.b16 %v323, %v322
      %v343 = vpack.c.b16 %v325, %v324
      %v344 = vpack.c.b16 %v327, %v326
      %v345 = vpack.c.b16 %v329, %v328
      %vm346 = vcmask 64512
      %v348 = vsel %vm346, %v330, 0
      %v351 = vsel %vm346, %v331, 0
      %v354 = vsel %vm346, %v332, 0
      %v357 = vsel %vm346, %v333, 0
      %v360 = vsel %vm346, %v334, 0
      %v363 = vsel %vm346, %v335, 0
      %v366 = vsel %vm346, %v336, 0
      %v369 = vsel %vm346, %v337, 0
      %v372 = vsel %vm346, %v338, 0
      %v375 = vsel %vm346, %v339, 0
      %v378 = vsel %vm346, %v340, 0
      %v381 = vsel %vm346, %v341, 0
      %v384 = vsel %vm346, %v342, 0
      %v387 = vsel %vm346, %v343, 0
      %v390 = vsel %vm346, %v344, 0
      %v393 = vsel %vm346, %v345, 0
      %vm395 = vcmask 1043456
      %v397 = vsel %vm395, %v258, 0
      %399 = vmatprep.subr.bf16.mxu0 0
      %400 = vmatpush1.bf16.msra.mxu0 %v397
      %401 = vmatprep.subr.bf16.mxu0 0
      %402 = vmatpush1.bf16.msra.mxu0 0
      %403 = vmatprep.subr.bf16.mxu0 0
      %404 = vmatpush1.bf16.msra.mxu0 0
      %405 = vmatprep.subr.bf16.mxu0 0
      %406 = vmatpush1.bf16.msra.mxu0 0
      %407 = vmatprep.subr.bf16.mxu0 0
      %408 = vmatpush1.bf16.msra.mxu0 0
      %409 = vmatprep.subr.bf16.mxu0 0
      %410 = vmatpush1.bf16.msra.mxu0 0
      %411 = vmatprep.subr.bf16.mxu0 0
      %412 = vmatpush1.bf16.msra.mxu0 0
      %413 = vmatprep.subr.bf16.mxu0 0
      %414 = vmatpush1.bf16.msra.mxu0 0
      %415 = vmatprep.subr.bf16.mxu0 0
      %416 = vmatpush1.bf16.msra.mxu0 0
      %417 = vmatprep.subr.bf16.mxu0 0
      %418 = vmatpush1.bf16.msra.mxu0 0
      %419 = vmatprep.subr.bf16.mxu0 0
      %420 = vmatpush1.bf16.msra.mxu0 0
      %421 = vmatprep.subr.bf16.mxu0 0
      %422 = vmatpush1.bf16.msra.mxu0 0
      %423 = vmatprep.subr.bf16.mxu0 0
      %424 = vmatpush1.bf16.msra.mxu0 0
      %425 = vmatprep.subr.bf16.mxu0 0
      %426 = vmatpush1.bf16.msra.mxu0 0
      %427 = vmatprep.subr.bf16.mxu0 0
      %428 = vmatpush1.bf16.msra.mxu0 0
      %429 = vmatprep.subr.bf16.mxu0 0
      %430 = vmatpush1.bf16.msra.mxu0 0
      %431 = vmatprep.mubr.bf16.mxu0 0
      %432 = vmatmul.mubr.bf16.gmra.mrb[0].mxu0 %v348
      %v433 = vpop.f32.mrb[0].mxu0
      %v434 = vadd.f32 %v264, %v433
      %v435 = vpop.f32.mrb[0].mxu0
      %v436 = vpop.f32.mrb[0].mxu0
      %v437 = vadd.f32 %v264, %v436
      %v438 = vpop.f32.mrb[0].mxu0
      %439 = vmatprep.mubr.bf16.mxu0 0
      %440 = vmatmul.mubr.bf16.gmra.mrb[0].mxu0 %v351
      %v441 = vpop.f32.mrb[0].mxu0
      %v442 = vadd.f32 %v264, %v441
      %v443 = vpop.f32.mrb[0].mxu0
      %v444 = vpop.f32.mrb[0].mxu0
      %v445 = vadd.f32 %v264, %v444
      %v446 = vpop.f32.mrb[0].mxu0
      %447 = vmatprep.mubr.bf16.mxu0 0
      %448 = vmatmul.mubr.bf16.gmra.mrb[0].mxu0 %v354
      %v449 = vpop.f32.mrb[0].mxu0
      %v450 = vadd.f32 %v264, %v449
      %v451 = vpop.f32.mrb[0].mxu0
      %v452 = vpop.f32.mrb[0].mxu0
      %v453 = vadd.f32 %v264, %v452
      %v454 = vpop.f32.mrb[0].mxu0
      %455 = vmatprep.mubr.bf16.mxu0 0
      %456 = vmatmul.mubr.bf16.gmra.mrb[0].mxu0 %v357
      %v457 = vpop.f32.mrb[0].mxu0
      %v458 = vadd.f32 %v264, %v457
      %v459 = vpop.f32.mrb[0].mxu0
      %v460 = vpop.f32.mrb[0].mxu0
      %v461 = vadd.f32 %v264, %v460
      %v462 = vpop.f32.mrb[0].mxu0
      %463 = vmatprep.mubr.bf16.mxu0 0
      %464 = vmatmul.mubr.bf16.gmra.mrb[0].mxu0 %v360
      %v465 = vpop.f32.mrb[0].mxu0
      %v466 = vadd.f32 %v264, %v465
      %v467 = vpop.f32.mrb[0].mxu0
      %v468 = vpop.f32.mrb[0].mxu0
      %v469 = vadd.f32 %v264, %v468
      %v470 = vpop.f32.mrb[0].mxu0
      %471 = vmatprep.mubr.bf16.mxu0 0
      %472 = vmatmul.mubr.bf16.gmra.mrb[0].mxu0 %v363
      %v473 = vpop.f32.mrb[0].mxu0
      %v474 = vadd.f32 %v264, %v473
      %v475 = vpop.f32.mrb[0].mxu0
      %v476 = vpop.f32.mrb[0].mxu0
      %v477 = vadd.f32 %v264, %v476
      %v478 = vpop.f32.mrb[0].mxu0
      %479 = vmatprep.mubr.bf16.mxu0 0
      %480 = vmatmul.mubr.bf16.gmra.mrb[0].mxu0 %v366
      %v481 = vpop.f32.mrb[0].mxu0
      %v482 = vadd.f32 %v264, %v481
      %v483 = vpop.f32.mrb[0].mxu0
      %v484 = vpop.f32.mrb[0].mxu0
      %v485 = vadd.f32 %v264, %v484
      %v486 = vpop.f32.mrb[0].mxu0
      %487 = vmatprep.mubr.bf16.mxu0 0
      %488 = vmatmul.mubr.bf16.gmra.mrb[0].mxu0 %v369
      %v489 = vpop.f32.mrb[0].mxu0
      %v490 = vadd.f32 %v264, %v489
      %v491 = vpop.f32.mrb[0].mxu0
      %v492 = vpop.f32.mrb[0].mxu0
      %v493 = vadd.f32 %v264, %v492
      %v494 = vpop.f32.mrb[0].mxu0
      %495 = vmatprep.mubr.bf16.mxu0 0
      %496 = vmatmul.mubr.bf16.gmra.mrb[0].mxu0 %v372
      %v497 = vpop.f32.mrb[0].mxu0
      %v498 = vadd.f32 %v264, %v497
      %v499 = vpop.f32.mrb[0].mxu0
      %v500 = vpop.f32.mrb[0].mxu0
      %v501 = vadd.f32 %v264, %v500
      %v502 = vpop.f32.mrb[0].mxu0
      %503 = vmatprep.mubr.bf16.mxu0 0
      %504 = vmatmul.mubr.bf16.gmra.mrb[0].mxu0 %v375
      %v505 = vpop.f32.mrb[0].mxu0
      %v506 = vadd.f32 %v264, %v505
      %v507 = vpop.f32.mrb[0].mxu0
      %v508 = vpop.f32.mrb[0].mxu0
      %v509 = vadd.f32 %v264, %v508
      %v510 = vpop.f32.mrb[0].mxu0
      %511 = vmatprep.mubr.bf16.mxu0 0
      %512 = vmatmul.mubr.bf16.gmra.mrb[0].mxu0 %v378
      %v513 = vpop.f32.mrb[0].mxu0
      %v514 = vadd.f32 %v264, %v513
      %v515 = vpop.f32.mrb[0].mxu0
      %v516 = vpop.f32.mrb[0].mxu0
      %v517 = vadd.f32 %v264, %v516
      %v518 = vpop.f32.mrb[0].mxu0
      %519 = vmatprep.mubr.bf16.mxu0 0
      %520 = vmatmul.mubr.bf16.gmra.mrb[0].mxu0 %v381
      %v521 = vpop.f32.mrb[0].mxu0
      %v522 = vadd.f32 %v264, %v521
      %v523 = vpop.f32.mrb[0].mxu0
      %v524 = vpop.f32.mrb[0].mxu0
      %v525 = vadd.f32 %v264, %v524
      %v526 = vpop.f32.mrb[0].mxu0
      %527 = vmatprep.mubr.bf16.mxu0 0
      %528 = vmatmul.mubr.bf16.gmra.mrb[0].mxu0 %v384
      %v529 = vpop.f32.mrb[0].mxu0
      %v530 = vadd.f32 %v264, %v529
      %v531 = vpop.f32.mrb[0].mxu0
      %v532 = vpop.f32.mrb[0].mxu0
      %v533 = vadd.f32 %v264, %v532
      %v534 = vpop.f32.mrb[0].mxu0
      %535 = vmatprep.mubr.bf16.mxu0 0
      %536 = vmatmul.mubr.bf16.gmra.mrb[0].mxu0 %v387
      %v537 = vpop.f32.mrb[0].mxu0
      %v538 = vadd.f32 %v264, %v537
      %v539 = vpop.f32.mrb[0].mxu0
      %v540 = vpop.f32.mrb[0].mxu0
      %v541 = vadd.f32 %v264, %v540
      %v542 = vpop.f32.mrb[0].mxu0
      %543 = vmatprep.mubr.bf16.mxu0 0
      %544 = vmatmul.mubr.bf16.gmra.mrb[0].mxu0 %v390
      %v545 = vpop.f32.mrb[0].mxu0
      %v546 = vadd.f32 %v264, %v545
      %v547 = vpop.f32.mrb[0].mxu0
      %v548 = vpop.f32.mrb[0].mxu0
      %v549 = vadd.f32 %v264, %v548
      %v550 = vpop.f32.mrb[0].mxu0
      %551 = vmatprep.mubr.bf16.mxu0 0
      %552 = vmatmul.mubr.bf16.gmra.mrb[0].mxu0 %v393
      %v553 = vpop.f32.mrb[0].mxu0
      %v554 = vadd.f32 %v264, %v553
      %v555 = vpop.f32.mrb[0].mxu0
      %v556 = vpop.f32.mrb[0].mxu0
      %v557 = vadd.f32 %v264, %v556
      %v558 = vpop.f32.mrb[0].mxu0
      %559 = vdwg.mxu0
      %v560 = vpack.c.bf16 %v437, %v434
      %v561 = vpack.c.bf16 %v445, %v442
      %v562 = vpack.c.bf16 %v453, %v450
      %v563 = vpack.c.bf16 %v461, %v458
      %v564 = vpack.c.bf16 %v469, %v466
      %v565 = vpack.c.bf16 %v477, %v474
      %v566 = vpack.c.bf16 %v485, %v482
      %v567 = vpack.c.bf16 %v493, %v490
      %v568 = vpack.c.bf16 %v501, %v498
      %v569 = vpack.c.bf16 %v509, %v506
      %v570 = vpack.c.bf16 %v517, %v514
      %v571 = vpack.c.bf16 %v525, %v522
      %v572 = vpack.c.bf16 %v533, %v530
      %v573 = vpack.c.bf16 %v541, %v538
      %v574 = vpack.c.bf16 %v549, %v546
      %v575 = vpack.c.bf16 %v557, %v554
      %v592 = vunpack.c.l.b16 %v560
      %v593 = vunpack.c.h.b16 %v560
      %v594 = vunpack.c.l.b16 %v561
      %v595 = vunpack.c.h.b16 %v561
      %v596 = vunpack.c.l.b16 %v562
      %v597 = vunpack.c.h.b16 %v562
      %v598 = vunpack.c.l.b16 %v563
      %v599 = vunpack.c.h.b16 %v563
      %v600 = vunpack.c.l.b16 %v564
      %v601 = vunpack.c.h.b16 %v564
      %v602 = vunpack.c.l.b16 %v565
      %v603 = vunpack.c.h.b16 %v565
      %v604 = vunpack.c.l.b16 %v566
      %v605 = vunpack.c.h.b16 %v566
      %v606 = vunpack.c.l.b16 %v567
      %v607 = vunpack.c.h.b16 %v567
      %v608 = vunpack.c.l.b16 %v568
      %v609 = vunpack.c.h.b16 %v568
      %v610 = vunpack.c.l.b16 %v569
      %v611 = vunpack.c.h.b16 %v569
      %v612 = vunpack.c.l.b16 %v570
      %v613 = vunpack.c.h.b16 %v570
      %v614 = vunpack.c.l.b16 %v571
      %v615 = vunpack.c.h.b16 %v571
      %v616 = vunpack.c.l.b16 %v572
      %v617 = vunpack.c.h.b16 %v572
      %v618 = vunpack.c.l.b16 %v573
      %v619 = vunpack.c.h.b16 %v573
      %v620 = vunpack.c.l.b16 %v574
      %v621 = vunpack.c.h.b16 %v574
      %v622 = vunpack.c.l.b16 %v575
      %v623 = vunpack.c.h.b16 %v575
      %v624 = vpack.c.b16 %v592, %v592
      %v625 = vpack.c.b16 %v593, %v593
      %v626 = vpack.c.b16 %v594, %v594
      %v627 = vpack.c.b16 %v595, %v595
      %v628 = vpack.c.b16 %v596, %v596
      %v629 = vpack.c.b16 %v597, %v597
      %v630 = vpack.c.b16 %v598, %v598
      %v631 = vpack.c.b16 %v599, %v599
      %v632 = vpack.c.b16 %v600, %v600
      %v633 = vpack.c.b16 %v601, %v601
      %v634 = vpack.c.b16 %v602, %v602
      %v635 = vpack.c.b16 %v603, %v603
      %v636 = vpack.c.b16 %v604, %v604
      %v637 = vpack.c.b16 %v605, %v605
      %v638 = vpack.c.b16 %v606, %v606
      %v639 = vpack.c.b16 %v607, %v607
      %v640 = vpack.c.b16 %v608, %v608
      %v641 = vpack.c.b16 %v609, %v609
      %v642 = vpack.c.b16 %v610, %v610
      %v643 = vpack.c.b16 %v611, %v611
      %v644 = vpack.c.b16 %v612, %v612
      %v645 = vpack.c.b16 %v613, %v613
      %v646 = vpack.c.b16 %v614, %v614
      %v647 = vpack.c.b16 %v615, %v615
      %v648 = vpack.c.b16 %v616, %v616
      %v649 = vpack.c.b16 %v617, %v617
      %v650 = vpack.c.b16 %v618, %v618
      %v651 = vpack.c.b16 %v619, %v619
      %v652 = vpack.c.b16 %v620, %v620
      %v653 = vpack.c.b16 %v621, %v621
      %v654 = vpack.c.b16 %v622, %v622
      %v655 = vpack.c.b16 %v623, %v623
      %688 = vst [vmem:[%s223] sm:$0xf] %v624
      %689 = vst [vmem:[%s223 + $0x4] sm:$0xf] %v625
      %690 = vst [vmem:[%s223 + $0x8] sm:$0xf] %v626
      %691 = vst [vmem:[%s223 + $0xc] sm:$0xf] %v627
      %692 = vst [vmem:[%s223 + $0x10] sm:$0xf] %v628
      %693 = vst [vmem:[%s223 + $0x14] sm:$0xf] %v629
      %694 = vst [vmem:[%s223 + $0x18] sm:$0xf] %v630
      %695 = vst [vmem:[%s223 + $0x1c] sm:$0xf] %v631
      %696 = vst [vmem:[%s223 + $0x20] sm:$0xf] %v632
      %697 = vst [vmem:[%s223 + $0x24] sm:$0xf] %v633
      %698 = vst [vmem:[%s223 + $0x28] sm:$0xf] %v634
      %699 = vst [vmem:[%s223 + $0x2c] sm:$0xf] %v635
      %700 = vst [vmem:[%s223 + $0x30] sm:$0xf] %v636
      %701 = vst [vmem:[%s223 + $0x34] sm:$0xf] %v637
      %702 = vst [vmem:[%s223 + $0x38] sm:$0xf] %v638
      %703 = vst [vmem:[%s223 + $0x3c] sm:$0xf] %v639
      %704 = vst [vmem:[%s223 + $0x40] sm:$0xf] %v640
      %705 = vst [vmem:[%s223 + $0x44] sm:$0xf] %v641
      %706 = vst [vmem:[%s223 + $0x48] sm:$0xf] %v642
      %707 = vst [vmem:[%s223 + $0x4c] sm:$0xf] %v643
      %708 = vst [vmem:[%s223 + $0x50] sm:$0xf] %v644
      %709 = vst [vmem:[%s223 + $0x54] sm:$0xf] %v645
      %710 = vst [vmem:[%s223 + $0x58] sm:$0xf] %v646
      %711 = vst [vmem:[%s223 + $0x5c] sm:$0xf] %v647
      %712 = vst [vmem:[%s223 + $0x60] sm:$0xf] %v648
      %713 = vst [vmem:[%s223 + $0x64] sm:$0xf] %v649
      %714 = vst [vmem:[%s223 + $0x68] sm:$0xf] %v650
      %715 = vst [vmem:[%s223 + $0x6c] sm:$0xf] %v651
      %716 = vst [vmem:[%s223 + $0x70] sm:$0xf] %v652
      %717 = vst [vmem:[%s223 + $0x74] sm:$0xf] %v653
      %718 = vst [vmem:[%s223 + $0x78] sm:$0xf] %v654
      %719 = vst [vmem:[%s223 + $0x7c] sm:$0xf] %v655
      %s720 = smul.u32 32, %s18
      %p721 = scmp.lt.s32.totalorder %s720, 63
      %s722 = scalar_select %p721, %s720, 63
      %p723 = scmp.lt.s32.totalorder %s19, 0
      %s724 = scalar_select %p723, %s19, 0
      %s725 = sadd.s32 %s724, %s722
      %s726 = smul.addr %s725, 4
      %s727 = scalar_lea.vmem %s3, %s726
      // Predicated region
      $region33: #{wide_block_forward.6} parent=31 // pred_check
        %p728 = pneg %p124
      $region34: #{wide_block_forward.6} parent=31 // pred_check_branch
        %730 = sbr.rel (%p728) target = $region36
      $region35: #{wide_block_forward.6} parent=31 // pred_region
        %s731 = smul.u32 32, %s18
      $region36: #{wide_block_forward.6} parent=31 // pred_fallthru
        _
    $region32: #{wide_block_forward.6} parent=5 // pred_fallthru
      _
    %p732 = scmp.le.s32.totalorder 2, %s9
    // Predicated region
    $region37: #{wide_block_forward.6} parent=5 // pred_check
      %p733 = pneg %p732
    $region38: #{wide_block_forward.6} parent=5 // pred_check_branch
      %735 = sbr.rel (%p733) target = $region40
    $region39: #{wide_block_forward.6} parent=5 // pred_region
      %s736 = ssub.s32 %s9, 2
      // Predicated region
      $region41: #{wide_block_forward.6} parent=39 // pred_check
        %p737 = pneg %p130
      $region42: #{wide_block_forward.6} parent=39 // pred_check_branch
        %739 = sbr.rel (%p737) target = $region44
      $region43: #{wide_block_forward.6} parent=39 // pred_region
        %s740 = smul.u32 32, %s20
        %p741 = scmp.lt.s32.totalorder %s740, 63
        %s742 = scalar_select %p741, %s740, 63
        %p743 = scmp.lt.s32.totalorder %s21, 0
        %s744 = scalar_select %p743, %s21, 0
        %s745 = sadd.s32 %s744, %s742
        %s746 = smul.addr %s745, 4
        %s747 = scalar_lea.vmem %s3, %s746
      $region44: #{wide_block_forward.6} parent=39 // pred_fallthru
        _
    $region40: #{wide_block_forward.6} parent=5 // pred_fallthru
      _
  $region6: #{wide_block_forward.6} parent=0 // loop_footer
    %s13 = sadd.s32 1, %s9
  $region7: #{wide_block_forward.6} parent=0 // loop_footer_branch
    %8 = sbr.rel target = $region3
  $region8: #{wide_block_forward.6} parent=0 // loop_exit
    _

</llo_original>
